<compile_context>
chip_gen: v5e
topology: v5e:2x2
jax: 0.10.0
libtpu: 0.0.40
codegen_flags: <defaults>
</compile_context>

<pallas_src>
import math
import jax
import jax.numpy as jnp
from jax.experimental import pallas as pl
from jax.experimental.pallas import tpu as pltpu

OMEGA = 30.0

# ----------------------------- fast sine ------------------------------------
# sin(x) for moderate-magnitude arguments (SIREN activations are O(10)):
# range-reduce to [-pi, pi] with a two-constant Cody-Waite step, then an odd
# Taylor polynomial up to r^13 (max abs error ~2.2e-5 at |r| = pi).

_INV_TWO_PI = 0.15915494309189535
_TWO_PI_HI = 6.28125                    # exactly representable in f32
_TWO_PI_LO = 0.0019353071795864769      # 2*pi - _TWO_PI_HI

_S3 = -1.0 / 6.0
_S5 = 1.0 / 120.0
_S7 = -1.0 / 5040.0
_S9 = 1.0 / 362880.0
_S11 = -1.0 / 39916800.0
_S13 = 1.0 / 6227020800.0


def _fast_sin(x):
    k = jnp.round(x * _INV_TWO_PI)
    r = x - k * _TWO_PI_HI
    r = r - k * _TWO_PI_LO
    r2 = r * r
    p = _S13
    p = p * r2 + _S11
    p = p * r2 + _S9
    p = p * r2 + _S7
    p = p * r2 + _S5
    p = p * r2 + _S3
    return r + (r * r2) * p


# ----------------------------- kernels ---------------------------------------

def _resblock_kernel_transform(x_ref, w1t_ref, b1t_ref, w2_ref, b2_ref, o_ref):
    """in_features != out_features: skip path is a third SineLayer.

    w1t = [W1 | Wt] (bf16, omega folded), b1t = [b1 | bt] (f32, omega folded).
    A single fused x-side matmul fills the 256-wide MXU N dim on v6e/v7x.
    """
    dout = o_ref.shape[-1]
    x_bf = x_ref[...].astype(jnp.bfloat16)          # MXU input dtype

    z = jnp.dot(x_bf, w1t_ref[...], preferred_element_type=jnp.float32) + b1t_ref[...]
    s = _fast_sin(z)                                  # (tb, 2*Dout)
    h1 = s[:, :dout]                                  # lane-aligned split when Dout%128==0
    res = s[:, dout:]

    z2 = jnp.dot(h1.astype(jnp.bfloat16), w2_ref[...],
                 preferred_element_type=jnp.float32) + b2_ref[...]
    h2 = _fast_sin(z2)

    o_ref[...] = (0.5 * (h2 + res)).astype(o_ref.dtype)


def _resblock_kernel_identity(x_ref, w1_ref, b1_ref, w2_ref, b2_ref, o_ref):
    """in_features == out_features: skip path is the input itself."""
    x = x_ref[...]

    z1 = jnp.dot(x.astype(jnp.bfloat16), w1_ref[...],
                 preferred_element_type=jnp.float32) + b1_ref[...]
    h1 = _fast_sin(z1)

    z2 = jnp.dot(h1.astype(jnp.bfloat16), w2_ref[...],
                 preferred_element_type=jnp.float32) + b2_ref[...]
    h2 = _fast_sin(z2)

    o_ref[...] = (0.5 * (h2 + x)).astype(o_ref.dtype)


# ----------------------------- wrapper ----------------------------------------

def resblock_forward(x, params, *, tile_b=512, out_dtype=jnp.float32):
    """x: (B, in_features) f32.  params: output of prepare_params()."""
    B, Din = x.shape
    has_transform = "w1t" in params
    Dout = params["w2"].shape[1]

    # Batch tile: multiple of 8 (sublane); ragged batches handled by Pallas
    # partial-block clipping (no jnp.pad, no extra HBM copy of x).
    tb = max(8, min(tile_b, B))
    tb = (tb + 7) // 8 * 8
    grid = (pl.cdiv(B, tb),)   # keep >= 2 steps for v7x megacore when B > tb

    x_spec = pl.BlockSpec((tb, Din), lambda i: (i, 0))
    o_spec = pl.BlockSpec((tb, Dout), lambda i: (i, 0))
    # Constant index_map -> weights/biases stay resident in VMEM across grid steps.
    resident = lambda r, c: pl.BlockSpec((r, c), lambda i: (0, 0))

    # ---- VMEM budget from actual footprint (double-buffered x/out + resident
    # weights + generous bound on in-kernel f32 temporaries) -------------------
    x_tile = tb * Din * 4
    o_tile = tb * Dout * 4
    if has_transform:
        w_bytes = (Din * 2 * Dout + Dout * Dout) * 2 + (3 * Dout) * 4
        interm = 10 * tb * Dout * 4
    else:
        w_bytes = (Din * Dout + Dout * Dout) * 2 + (2 * Dout) * 4
        interm = 8 * tb * Dout * 4
    footprint = 2 * (x_tile + o_tile) + w_bytes + interm
    vmem_limit = int(min(56 * 2**20, max(footprint + 4 * 2**20, 16 * 2**20)))

    cparams = pltpu.CompilerParams(
        dimension_semantics=("parallel",),            # megacore sharding on v7x
        vmem_limit_bytes=vmem_limit,
    )

    # ---- cost estimate (advisory, helps XLA overlap neighbors) ---------------
    if has_transform:
        flops = 2 * B * Din * (2 * Dout) + 2 * B * Dout * Dout + 6 * B * Dout
        transcendentals = 3 * B * Dout
    else:
        flops = 2 * B * Din * Dout + 2 * B * Dout * Dout + 4 * B * Dout
        transcendentals = 2 * B * Dout
    cost = pl.CostEstimate(
        flops=int(flops),
        transcendentals=int(transcendentals),
        bytes_accessed=int(B * Din * 4 + B * Dout * 4 + w_bytes),
    )

    out_shape = jax.ShapeDtypeStruct((B, Dout), out_dtype)

    if has_transform:
        return pl.pallas_call(
            _resblock_kernel_transform,
            out_shape=out_shape,
            grid=grid,
            in_specs=[
                x_spec,
                resident(Din, 2 * Dout), resident(1, 2 * Dout),
                resident(Dout, Dout), resident(1, Dout),
            ],
            out_specs=o_spec,
            compiler_params=cparams,
            cost_estimate=cost,
        )(x, params["w1t"], params["b1t"], params["w2"], params["b2"])
    else:
        return pl.pallas_call(
            _resblock_kernel_identity,
            out_shape=out_shape,
            grid=grid,
            in_specs=[
                x_spec,
                resident(Din, Dout), resident(1, Dout),
                resident(Dout, Dout), resident(1, Dout),
            ],
            out_specs=o_spec,
            compiler_params=cparams,
            cost_estimate=cost,
        )(x, params["w1"], params["b1"], params["w2"], params["b2"])


# ----------------------------- params -----------------------------------------

def init_params(key, in_features, out_features, omega_0=OMEGA):
    """SIREN init matching SineLayer.init_weights (is_first=False) for weights;
    biases use PyTorch nn.Linear default uniform(-1/sqrt(fan_in), +1/sqrt(fan_in)).
    Weights stored transposed vs torch, i.e. (in, out), so kernels do x @ W."""
    ks = jax.random.split(key, 6)
    wb1 = math.sqrt(6.0 / in_features) / omega_0
    wb2 = math.sqrt(6.0 / out_features) / omega_0
    bb1 = 1.0 / math.sqrt(in_features)
    bb2 = 1.0 / math.sqrt(out_features)

    p = {
        "w1": jax.random.uniform(ks[0], (in_features, out_features), jnp.float32, -wb1, wb1),
        "b1": jax.random.uniform(ks[1], (1, out_features), jnp.float32, -bb1, bb1),
        "w2": jax.random.uniform(ks[2], (out_features, out_features), jnp.float32, -wb2, wb2),
        "b2": jax.random.uniform(ks[3], (1, out_features), jnp.float32, -bb2, bb2),
    }
    if in_features != out_features:
        p["wt"] = jax.random.uniform(ks[4], (in_features, out_features), jnp.float32, -wb1, wb1)
        p["bt"] = jax.random.uniform(ks[5], (1, out_features), jnp.float32, -bb1, bb1)
    return p


def prepare_params(params, omega_0=OMEGA):
    """Fold omega into the parameters (sin(w0*(xW+b)) == sin(x@(w0*W)+w0*b)),
    concatenate W1|Wt (and b1|bt) along the output axis for the fused x-side
    matmul, and store weights in bf16 for the MXU (biases stay f32)."""
    scaled = {k: jnp.float32(omega_0) * v for k, v in params.items()}
    out = {}
    if "wt" in scaled:
        out["w1t"] = jnp.concatenate([scaled["w1"], scaled["wt"]], axis=1).astype(jnp.bfloat16)
        out["b1t"] = jnp.concatenate([scaled["b1"], scaled["bt"]], axis=1)
    else:
        out["w1"] = scaled["w1"].astype(jnp.bfloat16)
        out["b1"] = scaled["b1"]
    out["w2"] = scaled["w2"].astype(jnp.bfloat16)
    out["b2"] = scaled["b2"]
    return out


# ----------------------------- references --------------------------------------

def resblock_reference(x, raw_params, omega_0=OMEGA):
    """Pure-f32 reference (exact PyTorch semantics)."""
    h1 = jnp.sin(omega_0 * (x @ raw_params["w1"] + raw_params["b1"]))
    h2 = jnp.sin(omega_0 * (h1 @ raw_params["w2"] + raw_params["b2"]))
    if "wt" in raw_params:
        res = jnp.sin(omega_0 * (x @ raw_params["wt"] + raw_params["bt"]))
    else:
        res = x
    return 0.5 * (h2 + res)


def resblock_reference_mirror(x, kparams):
    """Mirrors kernel arithmetic (bf16 dot inputs, f32 accumulation, omega folded,
    fused W1|Wt dot, fast-sin polynomial)."""
    dot = lambda a, b: jnp.dot(a.astype(jnp.bfloat16), b,
                               preferred_element_type=jnp.float32)
    if "w1t" in kparams:
        dout = kparams["w2"].shape[1]
        s = _fast_sin(dot(x, kparams["w1t"]) + kparams["b1t"])
        h1, res = s[:, :dout], s[:, dout:]
    else:
        h1 = _fast_sin(dot(x, kparams["w1"]) + kparams["b1"])
        res = x
    h2 = _fast_sin(dot(h1, kparams["w2"]) + kparams["b2"])
    return 0.5 * (h2 + res)


# ----------------------------- demo / check -------------------------------------

if __name__ == "__main__":
    key = jax.random.PRNGKey(0)
    k_x, k_p, k_x2, k_p2 = jax.random.split(key, 4)

    # --- transform branch (in != out): ragged batch -> 3 grid steps, last block
    #     partial (exercises pad-free edge handling) -----------------------------
    B, Din, Dout = 640, 64, 128
    x = jax.random.normal(k_x, (B, Din), dtype=jnp.float32)
    raw = init_params(k_p, Din, Dout)
    kp = prepare_params(raw)

    out = jax.block_until_ready(resblock_forward(x, kp, tile_b=256))
    assert out.shape == (B, Dout)
    assert jnp.allclose(out, resblock_reference_mirror(x, kp), atol=2e-3), \
        "mismatch vs kernel-math-mirrored reference (transform branch)"
    assert jnp.allclose(out, resblock_reference(x, raw), atol=6e-2), \
        "mismatch vs f32 reference (transform branch)"

    # --- identity branch (in == out): B smaller than the tile -> single partial
    #     block, still no padding copy ------------------------------------------
    B2, D2 = 100, 128
    x2 = jax.random.normal(k_x2, (B2, D2), dtype=jnp.float32)
    raw2 = init_params(k_p2, D2, D2)
    kp2 = prepare_params(raw2)

    out2 = jax.block_until_ready(resblock_forward(x2, kp2))
    assert out2.shape == (B2, D2)
    assert jnp.allclose(out2, resblock_reference_mirror(x2, kp2), atol=2e-3), \
        "mismatch vs kernel-math-mirrored reference (identity branch)"
    assert jnp.allclose(out2, resblock_reference(x2, raw2), atol=6e-2), \
        "mismatch vs f32 reference (identity branch)"

    print("KERNEL_OK")
</pallas_src>

<mosaic_0001>
module attributes {stable_mosaic.version = 11 : i64} {
  func.func @_resblock_kernel_transform(%arg0: i32, %arg1: memref<256x64xf32, #tpu.memory_space<vmem>>, %arg2: memref<64x256xbf16, #tpu.memory_space<vmem>>, %arg3: memref<1x256xf32, #tpu.memory_space<vmem>>, %arg4: memref<128x128xbf16, #tpu.memory_space<vmem>>, %arg5: memref<1x128xf32, #tpu.memory_space<vmem>>, %arg6: memref<256x128xf32, #tpu.memory_space<vmem>>) attributes {dimension_semantics = [#tpu.dimension_semantics<parallel>], iteration_bounds = array<i64: 3>, scalar_prefetch = 0 : i64, scratch_operands = 0 : i64, tpu.core_type = #tpu.core_type<tc>, window_params = [{transform_indices = @transform_0, window_bounds = array<i64: 256, 64>}, {pipeline_mode = #tpu.pipeline_mode<synchronous>, transform_indices = @transform_1, window_bounds = array<i64: 64, 256>}, {pipeline_mode = #tpu.pipeline_mode<synchronous>, transform_indices = @transform_2, window_bounds = array<i64: 1, 256>}, {pipeline_mode = #tpu.pipeline_mode<synchronous>, transform_indices = @transform_3, window_bounds = array<i64: 128, 128>}, {pipeline_mode = #tpu.pipeline_mode<synchronous>, transform_indices = @transform_4, window_bounds = array<i64: 1, 128>}, {transform_indices = @transform_5, window_bounds = array<i64: 256, 128>}]} {
    %c0 = arith.constant 0 : index
    %c0_0 = arith.constant 0 : index
    %0 = vector.load %arg1[%c0, %c0_0] : memref<256x64xf32, #tpu.memory_space<vmem>>, vector<256x64xf32>
    %1 = arith.truncf %0 : vector<256x64xf32> to vector<256x64xbf16>
    %c0_1 = arith.constant 0 : index
    %c0_2 = arith.constant 0 : index
    %2 = vector.load %arg2[%c0_1, %c0_2] : memref<64x256xbf16, #tpu.memory_space<vmem>>, vector<64x256xbf16>
    %cst = arith.constant dense<0.000000e+00> : vector<256x256xf32>
    %3 = tpu.matmul %1, %2, %cst {dimension_numbers = #tpu.dot_dimension_numbers<[1], [0], [0], [1], [0, 0, 1, 1], [], []>} : vector<256x64xbf16>, vector<64x256xbf16>, vector<256x256xf32> -> vector<256x256xf32>
    %c0_3 = arith.constant 0 : index
    %c0_4 = arith.constant 0 : index
    %4 = vector.load %arg3[%c0_3, %c0_4] : memref<1x256xf32, #tpu.memory_space<vmem>>, vector<1x256xf32>
    %5 = vector.broadcast %4 : vector<1x256xf32> to vector<256x256xf32>
    %6 = arith.addf %3, %5 : vector<256x256xf32>
    %cst_5 = arith.constant 0.159154937 : f32
    %7 = vector.broadcast %cst_5 : f32 to vector<256x256xf32>
    %8 = arith.mulf %6, %7 : vector<256x256xf32>
    %9 = math.roundeven %8 : vector<256x256xf32>
    %cst_6 = arith.constant 6.281250e+00 : f32
    %10 = vector.broadcast %cst_6 : f32 to vector<256x256xf32>
    %11 = arith.mulf %9, %10 : vector<256x256xf32>
    %12 = arith.subf %6, %11 : vector<256x256xf32>
    %cst_7 = arith.constant 0.00193530717 : f32
    %13 = vector.broadcast %cst_7 : f32 to vector<256x256xf32>
    %14 = arith.mulf %9, %13 : vector<256x256xf32>
    %15 = arith.subf %12, %14 : vector<256x256xf32>
    %16 = arith.mulf %15, %15 : vector<256x256xf32>
    %cst_8 = arith.constant 1.60590444E-10 : f32
    %17 = vector.broadcast %cst_8 : f32 to vector<256x256xf32>
    %18 = arith.mulf %17, %16 : vector<256x256xf32>
    %cst_9 = arith.constant -2.50521079E-8 : f32
    %19 = vector.broadcast %cst_9 : f32 to vector<256x256xf32>
    %20 = arith.addf %18, %19 : vector<256x256xf32>
    %21 = arith.mulf %20, %16 : vector<256x256xf32>
    %cst_10 = arith.constant 2.75573188E-6 : f32
    %22 = vector.broadcast %cst_10 : f32 to vector<256x256xf32>
    %23 = arith.addf %21, %22 : vector<256x256xf32>
    %24 = arith.mulf %23, %16 : vector<256x256xf32>
    %cst_11 = arith.constant -1.98412701E-4 : f32
    %25 = vector.broadcast %cst_11 : f32 to vector<256x256xf32>
    %26 = arith.addf %24, %25 : vector<256x256xf32>
    %27 = arith.mulf %26, %16 : vector<256x256xf32>
    %cst_12 = arith.constant 0.00833333377 : f32
    %28 = vector.broadcast %cst_12 : f32 to vector<256x256xf32>
    %29 = arith.addf %27, %28 : vector<256x256xf32>
    %30 = arith.mulf %29, %16 : vector<256x256xf32>
    %cst_13 = arith.constant -0.166666672 : f32
    %31 = vector.broadcast %cst_13 : f32 to vector<256x256xf32>
    %32 = arith.addf %30, %31 : vector<256x256xf32>
    %33 = arith.mulf %15, %16 : vector<256x256xf32>
    %34 = arith.mulf %33, %32 : vector<256x256xf32>
    %35 = arith.addf %15, %34 : vector<256x256xf32>
    %36 = vector.extract_strided_slice %35 {offsets = [0, 0], sizes = [256, 128], strides = [1, 1]} : vector<256x256xf32> to vector<256x128xf32>
    %37 = vector.extract_strided_slice %35 {offsets = [0, 128], sizes = [256, 128], strides = [1, 1]} : vector<256x256xf32> to vector<256x128xf32>
    %38 = arith.truncf %36 : vector<256x128xf32> to vector<256x128xbf16>
    %c0_14 = arith.constant 0 : index
    %c0_15 = arith.constant 0 : index
    %39 = vector.load %arg4[%c0_14, %c0_15] : memref<128x128xbf16, #tpu.memory_space<vmem>>, vector<128x128xbf16>
    %cst_16 = arith.constant dense<0.000000e+00> : vector<256x128xf32>
    %40 = tpu.matmul %38, %39, %cst_16 {dimension_numbers = #tpu.dot_dimension_numbers<[1], [0], [0], [1], [0, 0, 1, 1], [], []>} : vector<256x128xbf16>, vector<128x128xbf16>, vector<256x128xf32> -> vector<256x128xf32>
    %c0_17 = arith.constant 0 : index
    %c0_18 = arith.constant 0 : index
    %41 = vector.load %arg5[%c0_17, %c0_18] : memref<1x128xf32, #tpu.memory_space<vmem>>, vector<1x128xf32>
    %42 = vector.broadcast %41 : vector<1x128xf32> to vector<256x128xf32>
    %43 = arith.addf %40, %42 : vector<256x128xf32>
    %cst_19 = arith.constant 0.159154937 : f32
    %44 = vector.broadcast %cst_19 : f32 to vector<256x128xf32>
    %45 = arith.mulf %43, %44 : vector<256x128xf32>
    %46 = math.roundeven %45 : vector<256x128xf32>
    %cst_20 = arith.constant 6.281250e+00 : f32
    %47 = vector.broadcast %cst_20 : f32 to vector<256x128xf32>
    %48 = arith.mulf %46, %47 : vector<256x128xf32>
    %49 = arith.subf %43, %48 : vector<256x128xf32>
    %cst_21 = arith.constant 0.00193530717 : f32
    %50 = vector.broadcast %cst_21 : f32 to vector<256x128xf32>
    %51 = arith.mulf %46, %50 : vector<256x128xf32>
    %52 = arith.subf %49, %51 : vector<256x128xf32>
    %53 = arith.mulf %52, %52 : vector<256x128xf32>
    %cst_22 = arith.constant 1.60590444E-10 : f32
    %54 = vector.broadcast %cst_22 : f32 to vector<256x128xf32>
    %55 = arith.mulf %54, %53 : vector<256x128xf32>
    %cst_23 = arith.constant -2.50521079E-8 : f32
    %56 = vector.broadcast %cst_23 : f32 to vector<256x128xf32>
    %57 = arith.addf %55, %56 : vector<256x128xf32>
    %58 = arith.mulf %57, %53 : vector<256x128xf32>
    %cst_24 = arith.constant 2.75573188E-6 : f32
    %59 = vector.broadcast %cst_24 : f32 to vector<256x128xf32>
    %60 = arith.addf %58, %59 : vector<256x128xf32>
    %61 = arith.mulf %60, %53 : vector<256x128xf32>
    %cst_25 = arith.constant -1.98412701E-4 : f32
    %62 = vector.broadcast %cst_25 : f32 to vector<256x128xf32>
    %63 = arith.addf %61, %62 : vector<256x128xf32>
    %64 = arith.mulf %63, %53 : vector<256x128xf32>
    %cst_26 = arith.constant 0.00833333377 : f32
    %65 = vector.broadcast %cst_26 : f32 to vector<256x128xf32>
    %66 = arith.addf %64, %65 : vector<256x128xf32>
    %67 = arith.mulf %66, %53 : vector<256x128xf32>
    %cst_27 = arith.constant -0.166666672 : f32
    %68 = vector.broadcast %cst_27 : f32 to vector<256x128xf32>
    %69 = arith.addf %67, %68 : vector<256x128xf32>
    %70 = arith.mulf %52, %53 : vector<256x128xf32>
    %71 = arith.mulf %70, %69 : vector<256x128xf32>
    %72 = arith.addf %52, %71 : vector<256x128xf32>
    %73 = arith.addf %72, %37 : vector<256x128xf32>
    %cst_28 = arith.constant 5.000000e-01 : f32
    %74 = vector.broadcast %cst_28 : f32 to vector<256x128xf32>
    %75 = arith.mulf %74, %73 : vector<256x128xf32>
    %c0_29 = arith.constant 0 : index
    %c0_30 = arith.constant 0 : index
    %76 = vector.load %arg6[%c0_29, %c0_30] : memref<256x128xf32, #tpu.memory_space<vmem>>, vector<256x128xf32>
    tpu.vector_store %arg6[%c0_29, %c0_30], %75 {strides = array<i32>} : memref<256x128xf32, #tpu.memory_space<vmem>>, vector<256x128xf32>,
    return
  }
  func.func @transform_0(%arg0: i32) -> (i32, i32) {
    %c0_i32 = arith.constant 0 : i32
    %c0_i32_0 = arith.constant 0 : i32
    return %arg0, %c0_i32 : i32, i32
  }
  func.func @transform_1(%arg0: i32) -> (i32, i32) {
    %c0_i32 = arith.constant 0 : i32
    %c0_i32_0 = arith.constant 0 : i32
    %c0_i32_1 = arith.constant 0 : i32
    return %c0_i32, %c0_i32_0 : i32, i32
  }
  func.func @transform_2(%arg0: i32) -> (i32, i32) {
    %c0_i32 = arith.constant 0 : i32
    %c0_i32_0 = arith.constant 0 : i32
    %c0_i32_1 = arith.constant 0 : i32
    return %c0_i32, %c0_i32_0 : i32, i32
  }
  func.func @transform_3(%arg0: i32) -> (i32, i32) {
    %c0_i32 = arith.constant 0 : i32
    %c0_i32_0 = arith.constant 0 : i32
    %c0_i32_1 = arith.constant 0 : i32
    return %c0_i32, %c0_i32_0 : i32, i32
  }
  func.func @transform_4(%arg0: i32) -> (i32, i32) {
    %c0_i32 = arith.constant 0 : i32
    %c0_i32_0 = arith.constant 0 : i32
    %c0_i32_1 = arith.constant 0 : i32
    return %c0_i32, %c0_i32_0 : i32, i32
  }
  func.func @transform_5(%arg0: i32) -> (i32, i32) {
    %c0_i32 = arith.constant 0 : i32
    %c0_i32_0 = arith.constant 0 : i32
    return %arg0, %c0_i32 : i32, i32
  }
}

</mosaic_0001>

<llo_original>
// kernel: tpu_custom_call.1
$region0: #{tpu_custom_call.1}
  #allocation0 [shape = 'u32[]', space=smem, size = 0x4, offset = 0x4, fixed_abs, tag = 'smem constant byte address 0x4 - core index']
  #allocation1 [shape = 'u32[72,128]{1,0:T(1,128)}', space=vmem, size = 0x9000, scoped, tag = 'internal scratch']
  %s0 = inlined_call_operand.vmem [shape: f32[640,64], index: 0, kind: input, shape index: {}]
  %s1 = inlined_call_operand.vmem [shape: bf16[64,256], index: 1, kind: input, shape index: {}]
  %s2 = inlined_call_operand.vmem [shape: f32[1,256], index: 2, kind: input, shape index: {}]
  %s3 = inlined_call_operand.vmem [shape: bf16[128,128], index: 3, kind: input, shape index: {}]
  %s4 = inlined_call_operand.vmem [shape: f32[1,128], index: 4, kind: input, shape index: {}]
  %s5 = inlined_call_operand.hbm [shape: f32[640,128], index: 5, kind: output, shape index: {}]
  %s6 = sld [smem:[#allocation0]]
  $region53: #{tpu_custom_call.1} parent=0
    _
  %s8 = ssub.s32 1, %s6
  %s9 = scalar_select 0, %s8, %s6
  $region1: #{tpu_custom_call.1} parent=0
    #allocation2 [shape = 'u8[262144]{0}', space=vmem, size = 0x40000, scoped, tag = 'output window, operand 0']
    #allocation3 [shape = 's32[2]{0}', space=sflag, size = 0x8, scoped, tag = 'scoped memory for tpu_custom_call.1']
    %10 = vsyncpa [#allocation3], 0
    %s11 = scalar_lea.sflag [#allocation3], 1
    %12 = vsyncpa %s11, 0
    loop: start=0, step=1, limit=5
    $region2: #{tpu_custom_call.1} parent=1 // loop_pre_header
      _
    $region3: #{tpu_custom_call.1} parent=1 // loop_header
      %s14 = sphi 0, %s18
      %p15 = scmp.ge.s32.totalorder %s14, 5
      %s24 = sphi 0, %s26
      %s27 = sphi 0, %s24
      %s28 = sphi 0, %s27
      %s44 = sphi 0, %s28
      %s48 = sphi 0, %s48
      %s50 = sphi 0, %s48
      %s51 = sphi 0, %s50
      %s65 = sphi 0, %s51
      %s69 = sphi 0, %s69
      %s71 = sphi 0, %s69
      %s72 = sphi 0, %s71
      %s86 = sphi 0, %s72
      %s90 = sphi 0, %s90
      %s92 = sphi 0, %s90
      %s93 = sphi 0, %s92
      %s107 = sphi 0, %s93
      %s111 = sphi 0, %s111
      %s113 = sphi 0, %s111
      %s114 = sphi 0, %s113
      %s128 = sphi 0, %s114
      %s134 = sphi 0, %s136
      %s137 = sphi 0, %s134
      %s138 = sphi 0, %s137
      %s154 = sphi 0, %s138
    $region4: #{tpu_custom_call.1} parent=1 // loop_header_branch
      %17 = sbr.rel (%p15) target = $region8
    $region5: #{tpu_custom_call.1} parent=1 // loop_body
      %s19 = ssub.s32 %s14, 1
      %s20 = ssub.s32 %s14, 2
      %s21 = sadd.s32 %s14, 1
      %s22 = ssub.s32 %s14, %s21
      %p23 = scmp.eq.s32.totalorder %s22, 0
      %s25 = sadd.s32 %s24, 1
      %s26 = scalar_select %p23, %s24, %s25
      %p29 = pneg %p23
      %p30 = scmp.eq.s32.totalorder %s14, 2
      %p31 = por %p29, %p30
      %p32 = scmp.ne.s32.totalorder %s24, %s27
      %p33 = scmp.eq.s32.totalorder %s14, 0
      %p34 = por %p32, %p33
      %p35 = scmp.ne.s32.totalorder %s24, %s27
      %p36 = scmp.eq.s32.totalorder %s19, 2
      %p37 = por %p35, %p36
      %p38 = scmp.ne.s32.totalorder %s27, %s28
      %p39 = scmp.eq.s32.totalorder %s19, 0
      %p40 = por %p38, %p39
      %p41 = scmp.ne.s32.totalorder %s27, %s28
      %p42 = scmp.eq.s32.totalorder %s20, 2
      %p43 = por %p41, %p42
      %p45 = scmp.ne.s32.totalorder %s28, %s44
      %p46 = scmp.eq.s32.totalorder %s20, 0
      %p47 = por %p45, %p46
      %s49 = sadd.s32 %s48, 1
      %p52 = scmp.eq.s32.totalorder %s14, 2
      %p53 = scmp.ne.s32.totalorder %s48, %s50
      %p54 = scmp.eq.s32.totalorder %s14, 0
      %p55 = por %p53, %p54
      %p56 = scmp.ne.s32.totalorder %s48, %s50
      %p57 = scmp.eq.s32.totalorder %s19, 2
      %p58 = por %p56, %p57
      %p59 = scmp.ne.s32.totalorder %s50, %s51
      %p60 = scmp.eq.s32.totalorder %s19, 0
      %p61 = por %p59, %p60
      %p62 = scmp.ne.s32.totalorder %s50, %s51
      %p63 = scmp.eq.s32.totalorder %s20, 2
      %p64 = por %p62, %p63
      %p66 = scmp.ne.s32.totalorder %s51, %s65
      %p67 = scmp.eq.s32.totalorder %s20, 0
      %p68 = por %p66, %p67
      %s70 = sadd.s32 %s69, 1
      %p73 = scmp.eq.s32.totalorder %s14, 2
      %p74 = scmp.ne.s32.totalorder %s69, %s71
      %p75 = scmp.eq.s32.totalorder %s14, 0
      %p76 = por %p74, %p75
      %p77 = scmp.ne.s32.totalorder %s69, %s71
      %p78 = scmp.eq.s32.totalorder %s19, 2
      %p79 = por %p77, %p78
      %p80 = scmp.ne.s32.totalorder %s71, %s72
      %p81 = scmp.eq.s32.totalorder %s19, 0
      %p82 = por %p80, %p81
      %p83 = scmp.ne.s32.totalorder %s71, %s72
      %p84 = scmp.eq.s32.totalorder %s20, 2
      %p85 = por %p83, %p84
      %p87 = scmp.ne.s32.totalorder %s72, %s86
      %p88 = scmp.eq.s32.totalorder %s20, 0
      %p89 = por %p87, %p88
      %s91 = sadd.s32 %s90, 1
      %p94 = scmp.eq.s32.totalorder %s14, 2
      %p95 = scmp.ne.s32.totalorder %s90, %s92
      %p96 = scmp.eq.s32.totalorder %s14, 0
      %p97 = por %p95, %p96
      %p98 = scmp.ne.s32.totalorder %s90, %s92
      %p99 = scmp.eq.s32.totalorder %s19, 2
      %p100 = por %p98, %p99
      %p101 = scmp.ne.s32.totalorder %s92, %s93
      %p102 = scmp.eq.s32.totalorder %s19, 0
      %p103 = por %p101, %p102
      %p104 = scmp.ne.s32.totalorder %s92, %s93
      %p105 = scmp.eq.s32.totalorder %s20, 2
      %p106 = por %p104, %p105
      %p108 = scmp.ne.s32.totalorder %s93, %s107
      %p109 = scmp.eq.s32.totalorder %s20, 0
      %p110 = por %p108, %p109
      %s112 = sadd.s32 %s111, 1
      %p115 = scmp.eq.s32.totalorder %s14, 2
      %p116 = scmp.ne.s32.totalorder %s111, %s113
      %p117 = scmp.eq.s32.totalorder %s14, 0
      %p118 = por %p116, %p117
      %p119 = scmp.ne.s32.totalorder %s111, %s113
      %p120 = scmp.eq.s32.totalorder %s19, 2
      %p121 = por %p119, %p120
      %p122 = scmp.ne.s32.totalorder %s113, %s114
      %p123 = scmp.eq.s32.totalorder %s19, 0
      %p124 = por %p122, %p123
      %p125 = scmp.ne.s32.totalorder %s113, %s114
      %p126 = scmp.eq.s32.totalorder %s20, 2
      %p127 = por %p125, %p126
      %p129 = scmp.ne.s32.totalorder %s114, %s128
      %p130 = scmp.eq.s32.totalorder %s20, 0
      %p131 = por %p129, %p130
      %s132 = ssub.s32 %s14, %s21
      %p133 = scmp.eq.s32.totalorder %s132, 0
      %s135 = sadd.s32 %s134, 1
      %s136 = scalar_select %p133, %s134, %s135
      %p139 = pneg %p133
      %p140 = scmp.eq.s32.totalorder %s14, 2
      %p141 = por %p139, %p140
      %p142 = scmp.ne.s32.totalorder %s134, %s137
      %p143 = scmp.eq.s32.totalorder %s14, 0
      %p144 = por %p142, %p143
      %p145 = scmp.ne.s32.totalorder %s134, %s137
      %p146 = scmp.eq.s32.totalorder %s19, 2
      %p147 = por %p145, %p146
      %p148 = scmp.ne.s32.totalorder %s137, %s138
      %p149 = scmp.eq.s32.totalorder %s19, 0
      %p150 = por %p148, %p149
      %p151 = scmp.ne.s32.totalorder %s137, %s138
      %p152 = scmp.eq.s32.totalorder %s20, 2
      %p153 = por %p151, %p152
      %p155 = scmp.ne.s32.totalorder %s138, %s154
      %p156 = scmp.eq.s32.totalorder %s20, 0
      %p157 = por %p155, %p156
      %p158 = scmp.le.s32.totalorder 1, %s14
      %p159 = scmp.lt.s32.totalorder %s14, 4
      %p160 = pnand %p158, %p159
      %p161 = pneg %p160
      // Predicated region
      $region9: #{tpu_custom_call.1} parent=5 // pred_check
        _
      $region10: #{tpu_custom_call.1} parent=5 // pred_check_branch
        %163 = sbr.rel (%p160) target = $region12
      $region11: #{tpu_custom_call.1} parent=5 // pred_region
        %s164 = ssub.s32 %s14, 1
        // Predicated region
        $region13: #{tpu_custom_call.1} parent=11 // pred_check
          %p165 = pneg %p61
        $region14: #{tpu_custom_call.1} parent=11 // pred_check_branch
          %167 = sbr.rel (%p165) target = $region16
        $region15: #{tpu_custom_call.1} parent=11 // pred_region
          _
        $region16: #{tpu_custom_call.1} parent=11 // pred_fallthru
          _
        // Predicated region
        $region17: #{tpu_custom_call.1} parent=11 // pred_check
          %p168 = pneg %p82
        $region18: #{tpu_custom_call.1} parent=11 // pred_check_branch
          %170 = sbr.rel (%p168) target = $region20
        $region19: #{tpu_custom_call.1} parent=11 // pred_region
          _
        $region20: #{tpu_custom_call.1} parent=11 // pred_fallthru
          _
        // Predicated region
        $region21: #{tpu_custom_call.1} parent=11 // pred_check
          %p171 = pneg %p103
        $region22: #{tpu_custom_call.1} parent=11 // pred_check_branch
          %173 = sbr.rel (%p171) target = $region24
        $region23: #{tpu_custom_call.1} parent=11 // pred_region
          _
        $region24: #{tpu_custom_call.1} parent=11 // pred_fallthru
          _
        // Predicated region
        $region25: #{tpu_custom_call.1} parent=11 // pred_check
          %p174 = pneg %p124
        $region26: #{tpu_custom_call.1} parent=11 // pred_check_branch
          %176 = sbr.rel (%p174) target = $region28
        $region27: #{tpu_custom_call.1} parent=11 // pred_region
          _
        $region28: #{tpu_custom_call.1} parent=11 // pred_fallthru
          _
      $region12: #{tpu_custom_call.1} parent=5 // pred_fallthru
        _
      %p177 = scmp.lt.s32.totalorder %s14, 3
      // Predicated region
      $region29: #{tpu_custom_call.1} parent=5 // pred_check
        %p178 = pneg %p177
      $region30: #{tpu_custom_call.1} parent=5 // pred_check_branch
        %180 = sbr.rel (%p178) target = $region32
      $region31: #{tpu_custom_call.1} parent=5 // pred_region
        // Predicated region
        $region33: #{tpu_custom_call.1} parent=31 // pred_check
          %p181 = pneg %p34
        $region34: #{tpu_custom_call.1} parent=31 // pred_check_branch
          %183 = sbr.rel (%p181) target = $region36
        $region35: #{tpu_custom_call.1} parent=31 // pred_region
          %s184 = smul.u32 32, %s14
          %s185 = ssub.s32 80, %s184
          %p186 = scmp.lt.s32.totalorder %s185, 32
          %s187 = scalar_select %p186, %s185, 32
          %s188 = smul.u32 8, %s187
          %p189 = scmp.lt.s32.totalorder %s184, 79
          %s190 = scalar_select %p189, %s184, 79
          %s191 = smul.addr %s190, 8
          %s192 = scalar_lea.vmem %s0, %s191
          %s193 = smul.u32 32, %s14
          %s194 = ssub.s32 80, %s193
          %p195 = scmp.lt.s32.totalorder %s194, 32
          %s196 = scalar_select %p195, %s194, 32
          %s197 = smul.u32 8, %s196
        $region36: #{tpu_custom_call.1} parent=31 // pred_fallthru
          _
      $region32: #{tpu_custom_call.1} parent=5 // pred_fallthru
        _
      %p198 = scmp.le.s32.totalorder 1, %s14
      %p199 = scmp.lt.s32.totalorder %s14, 4
      %p200 = pnand %p198, %p199
      %p201 = pneg %p200
      // Predicated region
      $region37: #{tpu_custom_call.1} parent=5 // pred_check
        _
      $region38: #{tpu_custom_call.1} parent=5 // pred_check_branch
        %203 = sbr.rel (%p200) target = $region40
      $region39: #{tpu_custom_call.1} parent=5 // pred_region
        %s204 = ssub.s32 %s14, 1
        %s205 = smul.u32 32, %s19
        %s206 = ssub.s32 80, %s205
        %p207 = scmp.lt.s32.totalorder %s206, 32
        %s208 = scalar_select %p207, %s206, 32
        %s209 = smul.u32 8, %s208
        %p210 = scmp.lt.s32.totalorder %s205, 79
        %s211 = scalar_select %p210, %s205, 79
        %s212 = smul.addr %s211, 8
        %s213 = scalar_lea.vmem %s0, %s212
        %p214 = pneg %p40
        %p215 = pneg %p37
        %p216 = pneg %p61
        %p217 = pneg %p58
        %p218 = pneg %p82
        %p219 = pneg %p79
        %p220 = pneg %p103
        %p221 = pneg %p100
        %p222 = pneg %p124
        %p223 = pneg %p121
        %p224 = pneg %p150
        %p225 = pneg %p147
        %s226 = sand.u32 %s137, 1
        %s227 = scalar_lea.sflag [#allocation3], %s226
        %s228 = sand.u32 %s137, 1
        %s229 = smul.addr %s228, 256
        %s230 = scalar_lea.vmem [#allocation2], %s229
        %s231 = smul.u32 32, %s19
        %s232 = ssub.s32 80, %s231
        %p233 = scmp.lt.s32.totalorder %s232, 32
        %s234 = scalar_select %p233, %s232, 32
        %s235 = smul.u32 8, %s234
        %p236 = scmp.lt.s32.totalorder %s231, 79
        %s237 = scalar_select %p236, %s231, 79
        %s238 = smul.addr %s237, 8
        %s239 = scalar_lea.vmem %s0, %s238
        %s240 = smul.u32 32, %s19
        %s241 = ssub.s32 80, %s240
        %p242 = scmp.lt.s32.totalorder %s241, 32
        %s243 = scalar_select %p242, %s241, 32
        %s244 = smul.u32 8, %s243
        %s245 = smul.u32 32, %s19
        %s246 = ssub.s32 80, %s245
        %p247 = scmp.lt.s32.totalorder %s246, 32
        %s248 = scalar_select %p247, %s246, 32
        %s249 = smul.u32 8, %s248
        %v251 = vld [vmem:[%s239] sm:$0xff]
        %v252 = vld [vmem:[%s239 + $0x8] sm:$0xff]
        %v253 = vld [vmem:[%s239 + $0x10] sm:$0xff]
        %v254 = vld [vmem:[%s239 + $0x18] sm:$0xff]
        %v255 = vld [vmem:[%s239 + $0x20] sm:$0xff]
        %v256 = vld [vmem:[%s239 + $0x28] sm:$0xff]
        %v257 = vld [vmem:[%s239 + $0x30] sm:$0xff]
        %v258 = vld [vmem:[%s239 + $0x38] sm:$0xff]
        %v259 = vld [vmem:[%s239 + $0x40] sm:$0xff]
        %v260 = vld [vmem:[%s239 + $0x48] sm:$0xff]
        %v261 = vld [vmem:[%s239 + $0x50] sm:$0xff]
        %v262 = vld [vmem:[%s239 + $0x58] sm:$0xff]
        %v263 = vld [vmem:[%s239 + $0x60] sm:$0xff]
        %v264 = vld [vmem:[%s239 + $0x68] sm:$0xff]
        %v265 = vld [vmem:[%s239 + $0x70] sm:$0xff]
        %v266 = vld [vmem:[%s239 + $0x78] sm:$0xff]
        %v267 = vld [vmem:[%s239 + $0x80] sm:$0xff]
        %v268 = vld [vmem:[%s239 + $0x88] sm:$0xff]
        %v269 = vld [vmem:[%s239 + $0x90] sm:$0xff]
        %v270 = vld [vmem:[%s239 + $0x98] sm:$0xff]
        %v271 = vld [vmem:[%s239 + $0xa0] sm:$0xff]
        %v272 = vld [vmem:[%s239 + $0xa8] sm:$0xff]
        %v273 = vld [vmem:[%s239 + $0xb0] sm:$0xff]
        %v274 = vld [vmem:[%s239 + $0xb8] sm:$0xff]
        %v275 = vld [vmem:[%s239 + $0xc0] sm:$0xff]
        %v276 = vld [vmem:[%s239 + $0xc8] sm:$0xff]
        %v277 = vld [vmem:[%s239 + $0xd0] sm:$0xff]
        %v278 = vld [vmem:[%s239 + $0xd8] sm:$0xff]
        %v279 = vld [vmem:[%s239 + $0xe0] sm:$0xff]
        %v280 = vld [vmem:[%s239 + $0xe8] sm:$0xff]
        %v281 = vld [vmem:[%s239 + $0xf0] sm:$0xff]
        %v282 = vld [vmem:[%s239 + $0xf8] sm:$0xff]
        %v283 = vpack.c.bf16 %v252, %v251
        %v284 = vpack.c.bf16 %v254, %v253
        %v285 = vpack.c.bf16 %v256, %v255
        %v286 = vpack.c.bf16 %v258, %v257
        %v287 = vpack.c.bf16 %v260, %v259
        %v288 = vpack.c.bf16 %v262, %v261
        %v289 = vpack.c.bf16 %v264, %v263
        %v290 = vpack.c.bf16 %v266, %v265
        %v291 = vpack.c.bf16 %v268, %v267
        %v292 = vpack.c.bf16 %v270, %v269
        %v293 = vpack.c.bf16 %v272, %v271
        %v294 = vpack.c.bf16 %v274, %v273
        %v295 = vpack.c.bf16 %v276, %v275
        %v296 = vpack.c.bf16 %v278, %v277
        %v297 = vpack.c.bf16 %v280, %v279
        %v298 = vpack.c.bf16 %v282, %v281
        %v299 = vld [vmem:[%s1] sm:$0xff]
        %v300 = vld [vmem:[%s1 + $0x8] sm:$0xff]
        %v301 = vld [vmem:[%s1 + $0x10] sm:$0xff]
        %v302 = vld [vmem:[%s1 + $0x18] sm:$0xff]
        %v303 = vld [vmem:[%s1 + $0x20] sm:$0xff]
        %v304 = vld [vmem:[%s1 + $0x28] sm:$0xff]
        %v305 = vld [vmem:[%s1 + $0x30] sm:$0xff]
        %v306 = vld [vmem:[%s1 + $0x38] sm:$0xff]
        %v307 = vld [vmem:[%s2] sm:$0x3]
        %v309 = vperm.slane %v307, 0
        %v310 = vperm.slane %v307, 1
        %v321 = vunpack.c.l.b16 %v299
        %v322 = vunpack.c.h.b16 %v299
        %v323 = vunpack.c.l.b16 %v300
        %v324 = vunpack.c.h.b16 %v300
        %v325 = vunpack.c.l.b16 %v301
        %v326 = vunpack.c.h.b16 %v301
        %v327 = vunpack.c.l.b16 %v302
        %v328 = vunpack.c.h.b16 %v302
        %v329 = vunpack.c.l.b16 %v303
        %v330 = vunpack.c.h.b16 %v303
        %v331 = vunpack.c.l.b16 %v304
        %v332 = vunpack.c.h.b16 %v304
        %v333 = vunpack.c.l.b16 %v305
        %v334 = vunpack.c.h.b16 %v305
        %v335 = vunpack.c.l.b16 %v306
        %v336 = vunpack.c.h.b16 %v306
        %v337 = vpack.c.b16 %v323, %v321
        %v338 = vpack.c.b16 %v324, %v322
        %v339 = vpack.c.b16 %v327, %v325
        %v340 = vpack.c.b16 %v328, %v326
        %v341 = vpack.c.b16 %v331, %v329
        %v342 = vpack.c.b16 %v332, %v330
        %v343 = vpack.c.b16 %v335, %v333
        %v344 = vpack.c.b16 %v336, %v334
        %vm353 = vcmask 523264
        %v355 = vsel %vm353, %v283, 0
        %v358 = vsel %vm353, %v284, 0
        %v361 = vsel %vm353, %v285, 0
        %v364 = vsel %vm353, %v286, 0
        %v367 = vsel %vm353, %v287, 0
        %v370 = vsel %vm353, %v288, 0
        %v373 = vsel %vm353, %v289, 0
        %v376 = vsel %vm353, %v290, 0
        %v379 = vsel %vm353, %v291, 0
        %v382 = vsel %vm353, %v292, 0
        %v385 = vsel %vm353, %v293, 0
        %v388 = vsel %vm353, %v294, 0
        %v391 = vsel %vm353, %v295, 0
        %v394 = vsel %vm353, %v296, 0
        %v397 = vsel %vm353, %v297, 0
        %v400 = vsel %vm353, %v298, 0
        %402 = vmatpush.bf16.msra.mxu0 0
        %403 = vmatpush.bf16.msra.mxu0 0
        %404 = vmatpush.bf16.msra.mxu0 0
        %405 = vmatpush.bf16.msra.mxu0 0
        %406 = vmatpush.bf16.msra.mxu0 %v343
        %407 = vmatpush.bf16.msra.mxu0 %v341
        %408 = vmatpush.bf16.msra.mxu0 %v339
        %409 = vmatpush.bf16.msra.mxu0 %v337
        %410 = vmatmul.bf16.gmra.mxu0 %v355
        %v411 = vpop.f32.mrf.mxu0
        %v412 = vadd.f32 %v309, %v411
        %v413 = vpop.f32.mrf.mxu0
        %v414 = vadd.f32 %v309, %v413
        %415 = vmatmul.bf16.gmra.mxu0 %v358
        %v416 = vpop.f32.mrf.mxu0
        %v417 = vadd.f32 %v309, %v416
        %v418 = vpop.f32.mrf.mxu0
        %v419 = vadd.f32 %v309, %v418
        %420 = vmatmul.bf16.gmra.mxu0 %v361
        %v421 = vpop.f32.mrf.mxu0
        %v422 = vadd.f32 %v309, %v421
        %v423 = vpop.f32.mrf.mxu0
        %v424 = vadd.f32 %v309, %v423
        %425 = vmatmul.bf16.gmra.mxu0 %v364
        %v426 = vpop.f32.mrf.mxu0
        %v427 = vadd.f32 %v309, %v426
        %v428 = vpop.f32.mrf.mxu0
        %v429 = vadd.f32 %v309, %v428
        %430 = vmatmul.bf16.gmra.mxu0 %v367
        %v431 = vpop.f32.mrf.mxu0
        %v432 = vadd.f32 %v309, %v431
        %v433 = vpop.f32.mrf.mxu0
        %v434 = vadd.f32 %v309, %v433
        %435 = vmatmul.bf16.gmra.mxu0 %v370
        %v436 = vpop.f32.mrf.mxu0
        %v437 = vadd.f32 %v309, %v436
        %v438 = vpop.f32.mrf.mxu0
        %v439 = vadd.f32 %v309, %v438
        %440 = vmatmul.bf16.gmra.mxu0 %v373
        %v441 = vpop.f32.mrf.mxu0
        %v442 = vadd.f32 %v309, %v441
        %v443 = vpop.f32.mrf.mxu0
        %v444 = vadd.f32 %v309, %v443
        %445 = vmatmul.bf16.gmra.mxu0 %v376
        %v446 = vpop.f32.mrf.mxu0
        %v447 = vadd.f32 %v309, %v446
        %v448 = vpop.f32.mrf.mxu0
        %v449 = vadd.f32 %v309, %v448
        %450 = vmatmul.bf16.gmra.mxu0 %v379
        %v451 = vpop.f32.mrf.mxu0
        %v452 = vadd.f32 %v309, %v451
        %v453 = vpop.f32.mrf.mxu0
        %v454 = vadd.f32 %v309, %v453
        %455 = vmatmul.bf16.gmra.mxu0 %v382
        %v456 = vpop.f32.mrf.mxu0
        %v457 = vadd.f32 %v309, %v456
        %v458 = vpop.f32.mrf.mxu0
        %v459 = vadd.f32 %v309, %v458
        %460 = vmatmul.bf16.gmra.mxu0 %v385
        %v461 = vpop.f32.mrf.mxu0
        %v462 = vadd.f32 %v309, %v461
        %v463 = vpop.f32.mrf.mxu0
        %v464 = vadd.f32 %v309, %v463
        %465 = vmatmul.bf16.gmra.mxu0 %v388
        %v466 = vpop.f32.mrf.mxu0
        %v467 = vadd.f32 %v309, %v466
        %v468 = vpop.f32.mrf.mxu0
        %v469 = vadd.f32 %v309, %v468
        %470 = vmatmul.bf16.gmra.mxu0 %v391
        %v471 = vpop.f32.mrf.mxu0
        %v472 = vadd.f32 %v309, %v471
        %v473 = vpop.f32.mrf.mxu0
        %v474 = vadd.f32 %v309, %v473
        %475 = vmatmul.bf16.gmra.mxu0 %v394
        %v476 = vpop.f32.mrf.mxu0
        %v477 = vadd.f32 %v309, %v476
        %v478 = vpop.f32.mrf.mxu0
        %v479 = vadd.f32 %v309, %v478
        %480 = vmatmul.bf16.gmra.mxu0 %v397
        %v481 = vpop.f32.mrf.mxu0
        %v482 = vadd.f32 %v309, %v481
        %v483 = vpop.f32.mrf.mxu0
        %v484 = vadd.f32 %v309, %v483
        %485 = vmatmul.bf16.gmra.mxu0 %v400
        %v486 = vpop.f32.mrf.mxu0
        %v487 = vadd.f32 %v309, %v486
        %v488 = vpop.f32.mrf.mxu0
        %v489 = vadd.f32 %v309, %v488
        %490 = vdwg.mxu0
        %491 = vmatpush.bf16.msra.mxu0 0
        %492 = vmatpush.bf16.msra.mxu0 0
        %493 = vmatpush.bf16.msra.mxu0 0
        %494 = vmatpush.bf16.msra.mxu0 0
        %495 = vmatpush.bf16.msra.mxu0 %v344
        %496 = vmatpush.bf16.msra.mxu0 %v342
        %497 = vmatpush.bf16.msra.mxu0 %v340
        %498 = vmatpush.bf16.msra.mxu0 %v338
        %499 = vmatmul.bf16.gmra.mxu0 %v355
        %v500 = vpop.f32.mrf.mxu0
        %v501 = vadd.f32 %v310, %v500
        %v502 = vpop.f32.mrf.mxu0
        %v503 = vadd.f32 %v310, %v502
        %504 = vmatmul.bf16.gmra.mxu0 %v358
        %v505 = vpop.f32.mrf.mxu0
        %v506 = vadd.f32 %v310, %v505
        %v507 = vpop.f32.mrf.mxu0
        %v508 = vadd.f32 %v310, %v507
        %509 = vmatmul.bf16.gmra.mxu0 %v361
        %v510 = vpop.f32.mrf.mxu0
        %v511 = vadd.f32 %v310, %v510
        %v512 = vpop.f32.mrf.mxu0
        %v513 = vadd.f32 %v310, %v512
        %514 = vmatmul.bf16.gmra.mxu0 %v364
        %v515 = vpop.f32.mrf.mxu0
        %v516 = vadd.f32 %v310, %v515
        %v517 = vpop.f32.mrf.mxu0
        %v518 = vadd.f32 %v310, %v517
        %519 = vmatmul.bf16.gmra.mxu0 %v367
        %v520 = vpop.f32.mrf.mxu0
        %v521 = vadd.f32 %v310, %v520
        %v522 = vpop.f32.mrf.mxu0
        %v523 = vadd.f32 %v310, %v522
        %524 = vmatmul.bf16.gmra.mxu0 %v370
        %v525 = vpop.f32.mrf.mxu0
        %v526 = vadd.f32 %v310, %v525
        %v527 = vpop.f32.mrf.mxu0
        %v528 = vadd.f32 %v310, %v527
        %529 = vmatmul.bf16.gmra.mxu0 %v373
        %v530 = vpop.f32.mrf.mxu0
        %v531 = vadd.f32 %v310, %v530
        %v532 = vpop.f32.mrf.mxu0
        %v533 = vadd.f32 %v310, %v532
        %534 = vmatmul.bf16.gmra.mxu0 %v376
        %v535 = vpop.f32.mrf.mxu0
        %v536 = vadd.f32 %v310, %v535
        %v537 = vpop.f32.mrf.mxu0
        %v538 = vadd.f32 %v310, %v537
        %539 = vmatmul.bf16.gmra.mxu0 %v379
        %v540 = vpop.f32.mrf.mxu0
        %v541 = vadd.f32 %v310, %v540
        %v542 = vpop.f32.mrf.mxu0
        %v543 = vadd.f32 %v310, %v542
        %544 = vmatmul.bf16.gmra.mxu0 %v382
        %v545 = vpop.f32.mrf.mxu0
        %v546 = vadd.f32 %v310, %v545
        %v547 = vpop.f32.mrf.mxu0
        %v548 = vadd.f32 %v310, %v547
        %549 = vmatmul.bf16.gmra.mxu0 %v385
        %v550 = vpop.f32.mrf.mxu0
        %v551 = vadd.f32 %v310, %v550
        %v552 = vpop.f32.mrf.mxu0
        %v553 = vadd.f32 %v310, %v552
        %554 = vmatmul.bf16.gmra.mxu0 %v388
        %v555 = vpop.f32.mrf.mxu0
        %v556 = vadd.f32 %v310, %v555
        %v557 = vpop.f32.mrf.mxu0
        %v558 = vadd.f32 %v310, %v557
        %559 = vmatmul.bf16.gmra.mxu0 %v391
        %v560 = vpop.f32.mrf.mxu0
        %v561 = vadd.f32 %v310, %v560
        %v562 = vpop.f32.mrf.mxu0
        %v563 = vadd.f32 %v310, %v562
        %564 = vmatmul.bf16.gmra.mxu0 %v394
        %v565 = vpop.f32.mrf.mxu0
        %v566 = vadd.f32 %v310, %v565
        %v567 = vpop.f32.mrf.mxu0
        %v568 = vadd.f32 %v310, %v567
        %569 = vmatmul.bf16.gmra.mxu0 %v397
        %v570 = vpop.f32.mrf.mxu0
        %v571 = vadd.f32 %v310, %v570
        %v572 = vpop.f32.mrf.mxu0
        %v573 = vadd.f32 %v310, %v572
        %574 = vmatmul.bf16.gmra.mxu0 %v400
        %v575 = vpop.f32.mrf.mxu0
        %v576 = vadd.f32 %v310, %v575
        %v577 = vpop.f32.mrf.mxu0
        %v578 = vadd.f32 %v310, %v577
        %579 = vdwg.mxu0
        %v580 = vmul.f32 %v412, 0.15915494
        %v581 = vmul.f32 %v501, 0.15915494
        %v582 = vmul.f32 %v414, 0.15915494
        %v583 = vmul.f32 %v503, 0.15915494
        %v584 = vmul.f32 %v417, 0.15915494
        %v585 = vmul.f32 %v506, 0.15915494
        %v586 = vmul.f32 %v419, 0.15915494
        %v587 = vmul.f32 %v508, 0.15915494
        %v588 = vmul.f32 %v422, 0.15915494
        %v589 = vmul.f32 %v511, 0.15915494
        %v590 = vmul.f32 %v424, 0.15915494
        %v591 = vmul.f32 %v513, 0.15915494
        %v592 = vmul.f32 %v427, 0.15915494
        %v593 = vmul.f32 %v516, 0.15915494
        %v594 = vmul.f32 %v429, 0.15915494
        %v595 = vmul.f32 %v518, 0.15915494
        %v596 = vmul.f32 %v432, 0.15915494
        %v597 = vmul.f32 %v521, 0.15915494
        %v598 = vmul.f32 %v434, 0.15915494
        %v599 = vmul.f32 %v523, 0.15915494
        %v600 = vmul.f32 %v437, 0.15915494
        %v601 = vmul.f32 %v526, 0.15915494
        %v602 = vmul.f32 %v439, 0.15915494
        %v603 = vmul.f32 %v528, 0.15915494
        %v604 = vmul.f32 %v442, 0.15915494
        %v605 = vmul.f32 %v531, 0.15915494
        %v606 = vmul.f32 %v444, 0.15915494
        %v607 = vmul.f32 %v533, 0.15915494
        %v608 = vmul.f32 %v447, 0.15915494
        %v609 = vmul.f32 %v536, 0.15915494
        %v610 = vmul.f32 %v449, 0.15915494
        %v611 = vmul.f32 %v538, 0.15915494
        %v612 = vmul.f32 %v452, 0.15915494
        %v613 = vmul.f32 %v541, 0.15915494
        %v614 = vmul.f32 %v454, 0.15915494
        %v615 = vmul.f32 %v543, 0.15915494
        %v616 = vmul.f32 %v457, 0.15915494
        %v617 = vmul.f32 %v546, 0.15915494
        %v618 = vmul.f32 %v459, 0.15915494
        %v619 = vmul.f32 %v548, 0.15915494
        %v620 = vmul.f32 %v462, 0.15915494
        %v621 = vmul.f32 %v551, 0.15915494
        %v622 = vmul.f32 %v464, 0.15915494
        %v623 = vmul.f32 %v553, 0.15915494
        %v624 = vmul.f32 %v467, 0.15915494
        %v625 = vmul.f32 %v556, 0.15915494
        %v626 = vmul.f32 %v469, 0.15915494
        %v627 = vmul.f32 %v558, 0.15915494
        %v628 = vmul.f32 %v472, 0.15915494
        %v629 = vmul.f32 %v561, 0.15915494
        %v630 = vmul.f32 %v474, 0.15915494
        %v631 = vmul.f32 %v563, 0.15915494
        %v632 = vmul.f32 %v477, 0.15915494
        %v633 = vmul.f32 %v566, 0.15915494
        %v634 = vmul.f32 %v479, 0.15915494
        %v635 = vmul.f32 %v568, 0.15915494
        %v636 = vmul.f32 %v482, 0.15915494
        %v637 = vmul.f32 %v571, 0.15915494
        %v638 = vmul.f32 %v484, 0.15915494
        %v639 = vmul.f32 %v573, 0.15915494
        %v640 = vmul.f32 %v487, 0.15915494
        %v641 = vmul.f32 %v576, 0.15915494
        %v642 = vmul.f32 %v489, 0.15915494
        %v643 = vmul.f32 %v578, 0.15915494
        %v644 = vround.ne.pseudo %v580
        %v645 = vround.ne.pseudo %v581
        %v646 = vround.ne.pseudo %v582
        %v647 = vround.ne.pseudo %v583
        %v648 = vround.ne.pseudo %v584
        %v649 = vround.ne.pseudo %v585
        %v650 = vround.ne.pseudo %v586
        %v651 = vround.ne.pseudo %v587
        %v652 = vround.ne.pseudo %v588
        %v653 = vround.ne.pseudo %v589
        %v654 = vround.ne.pseudo %v590
        %v655 = vround.ne.pseudo %v591
        %v656 = vround.ne.pseudo %v592
        %v657 = vround.ne.pseudo %v593
        %v658 = vround.ne.pseudo %v594
        %v659 = vround.ne.pseudo %v595
        %v660 = vround.ne.pseudo %v596
        %v661 = vround.ne.pseudo %v597
        %v662 = vround.ne.pseudo %v598
        %v663 = vround.ne.pseudo %v599
        %v664 = vround.ne.pseudo %v600
        %v665 = vround.ne.pseudo %v601
        %v666 = vround.ne.pseudo %v602
        %v667 = vround.ne.pseudo %v603
        %v668 = vround.ne.pseudo %v604
        %v669 = vround.ne.pseudo %v605
        %v670 = vround.ne.pseudo %v606
        %v671 = vround.ne.pseudo %v607
        %v672 = vround.ne.pseudo %v608
        %v673 = vround.ne.pseudo %v609
        %v674 = vround.ne.pseudo %v610
        %v675 = vround.ne.pseudo %v611
        %v676 = vround.ne.pseudo %v612
        %v677 = vround.ne.pseudo %v613
        %v678 = vround.ne.pseudo %v614
        %v679 = vround.ne.pseudo %v615
        %v680 = vround.ne.pseudo %v616
        %v681 = vround.ne.pseudo %v617
        %v682 = vround.ne.pseudo %v618
        %v683 = vround.ne.pseudo %v619
        %v684 = vround.ne.pseudo %v620
        %v685 = vround.ne.pseudo %v621
        %v686 = vround.ne.pseudo %v622
        %v687 = vround.ne.pseudo %v623
        %v688 = vround.ne.pseudo %v624
        %v689 = vround.ne.pseudo %v625
        %v690 = vround.ne.pseudo %v626
        %v691 = vround.ne.pseudo %v627
        %v692 = vround.ne.pseudo %v628
        %v693 = vround.ne.pseudo %v629
        %v694 = vround.ne.pseudo %v630
        %v695 = vround.ne.pseudo %v631
        %v696 = vround.ne.pseudo %v632
        %v697 = vround.ne.pseudo %v633
        %v698 = vround.ne.pseudo %v634
        %v699 = vround.ne.pseudo %v635
        %v700 = vround.ne.pseudo %v636
        %v701 = vround.ne.pseudo %v637
        %v702 = vround.ne.pseudo %v638
        %v703 = vround.ne.pseudo %v639
        %v704 = vround.ne.pseudo %v640
        %v705 = vround.ne.pseudo %v641
        %v706 = vround.ne.pseudo %v642
        %v707 = vround.ne.pseudo %v643
        %v708 = vmul.f32 %v644, 6.28125
        %v709 = vmul.f32 %v645, 6.28125
        %v710 = vmul.f32 %v646, 6.28125
        %v711 = vmul.f32 %v647, 6.28125
        %v712 = vmul.f32 %v648, 6.28125
        %v713 = vmul.f32 %v649, 6.28125
        %v714 = vmul.f32 %v650, 6.28125
        %v715 = vmul.f32 %v651, 6.28125
        %v716 = vmul.f32 %v652, 6.28125
        %v717 = vmul.f32 %v653, 6.28125
        %v718 = vmul.f32 %v654, 6.28125
        %v719 = vmul.f32 %v655, 6.28125
        %v720 = vmul.f32 %v656, 6.28125
        %v721 = vmul.f32 %v657, 6.28125
        %v722 = vmul.f32 %v658, 6.28125
        %v723 = vmul.f32 %v659, 6.28125
        %v724 = vmul.f32 %v660, 6.28125
        %v725 = vmul.f32 %v661, 6.28125
        %v726 = vmul.f32 %v662, 6.28125
        %v727 = vmul.f32 %v663, 6.28125
        %v728 = vmul.f32 %v664, 6.28125
        %v729 = vmul.f32 %v665, 6.28125
        %v730 = vmul.f32 %v666, 6.28125
        %v731 = vmul.f32 %v667, 6.28125
        %v732 = vmul.f32 %v668, 6.28125
        %v733 = vmul.f32 %v669, 6.28125
        %v734 = vmul.f32 %v670, 6.28125
        %v735 = vmul.f32 %v671, 6.28125
        %v736 = vmul.f32 %v672, 6.28125
        %v737 = vmul.f32 %v673, 6.28125
        %v738 = vmul.f32 %v674, 6.28125
        %v739 = vmul.f32 %v675, 6.28125
        %v740 = vmul.f32 %v676, 6.28125
        %v741 = vmul.f32 %v677, 6.28125
        %v742 = vmul.f32 %v678, 6.28125
        %v743 = vmul.f32 %v679, 6.28125
        %v744 = vmul.f32 %v680, 6.28125
        %v745 = vmul.f32 %v681, 6.28125
        %v746 = vmul.f32 %v682, 6.28125
        %v747 = vmul.f32 %v683, 6.28125
        %v748 = vmul.f32 %v684, 6.28125
        %v749 = vmul.f32 %v685, 6.28125
        %v750 = vmul.f32 %v686, 6.28125
        %v751 = vmul.f32 %v687, 6.28125
        %v752 = vmul.f32 %v688, 6.28125
        %v753 = vmul.f32 %v689, 6.28125
        %v754 = vmul.f32 %v690, 6.28125
        %v755 = vmul.f32 %v691, 6.28125
        %v756 = vmul.f32 %v692, 6.28125
        %v757 = vmul.f32 %v693, 6.28125
        %v758 = vmul.f32 %v694, 6.28125
        %v759 = vmul.f32 %v695, 6.28125
        %v760 = vmul.f32 %v696, 6.28125
        %v761 = vmul.f32 %v697, 6.28125
        %v762 = vmul.f32 %v698, 6.28125
        %v763 = vmul.f32 %v699, 6.28125
        %v764 = vmul.f32 %v700, 6.28125
        %v765 = vmul.f32 %v701, 6.28125
        %v766 = vmul.f32 %v702, 6.28125
        %v767 = vmul.f32 %v703, 6.28125
        %v768 = vmul.f32 %v704, 6.28125
        %v769 = vmul.f32 %v705, 6.28125
        %v770 = vmul.f32 %v706, 6.28125
        %v771 = vmul.f32 %v707, 6.28125
        %v772 = vsub.f32 %v412, %v708
        %v773 = vsub.f32 %v501, %v709
        %v774 = vsub.f32 %v414, %v710
        %v775 = vsub.f32 %v503, %v711
        %v776 = vsub.f32 %v417, %v712
        %v777 = vsub.f32 %v506, %v713
        %v778 = vsub.f32 %v419, %v714
        %v779 = vsub.f32 %v508, %v715
        %v780 = vsub.f32 %v422, %v716
        %v781 = vsub.f32 %v511, %v717
        %v782 = vsub.f32 %v424, %v718
        %v783 = vsub.f32 %v513, %v719
        %v784 = vsub.f32 %v427, %v720
        %v785 = vsub.f32 %v516, %v721
        %v786 = vsub.f32 %v429, %v722
        %v787 = vsub.f32 %v518, %v723
        %v788 = vsub.f32 %v432, %v724
        %v789 = vsub.f32 %v521, %v725
        %v790 = vsub.f32 %v434, %v726
        %v791 = vsub.f32 %v523, %v727
        %v792 = vsub.f32 %v437, %v728
        %v793 = vsub.f32 %v526, %v729
        %v794 = vsub.f32 %v439, %v730
        %v795 = vsub.f32 %v528, %v731
        %v796 = vsub.f32 %v442, %v732
        %v797 = vsub.f32 %v531, %v733
        %v798 = vsub.f32 %v444, %v734
        %v799 = vsub.f32 %v533, %v735
        %v800 = vsub.f32 %v447, %v736
        %v801 = vsub.f32 %v536, %v737
        %v802 = vsub.f32 %v449, %v738
        %v803 = vsub.f32 %v538, %v739
        %v804 = vsub.f32 %v452, %v740
        %v805 = vsub.f32 %v541, %v741
        %v806 = vsub.f32 %v454, %v742
        %v807 = vsub.f32 %v543, %v743
        %v808 = vsub.f32 %v457, %v744
        %v809 = vsub.f32 %v546, %v745
        %v810 = vsub.f32 %v459, %v746
        %v811 = vsub.f32 %v548, %v747
        %v812 = vsub.f32 %v462, %v748
        %v813 = vsub.f32 %v551, %v749
        %v814 = vsub.f32 %v464, %v750
        %v815 = vsub.f32 %v553, %v751
        %v816 = vsub.f32 %v467, %v752
        %v817 = vsub.f32 %v556, %v753
        %v818 = vsub.f32 %v469, %v754
        %v819 = vsub.f32 %v558, %v755
        %v820 = vsub.f32 %v472, %v756
        %v821 = vsub.f32 %v561, %v757
        %v822 = vsub.f32 %v474, %v758
        %v823 = vsub.f32 %v563, %v759
        %v824 = vsub.f32 %v477, %v760
        %v825 = vsub.f32 %v566, %v761
        %v826 = vsub.f32 %v479, %v762
        %v827 = vsub.f32 %v568, %v763
        %v828 = vsub.f32 %v482, %v764
        %v829 = vsub.f32 %v571, %v765
        %v830 = vsub.f32 %v484, %v766
        %v831 = vsub.f32 %v573, %v767
        %v832 = vsub.f32 %v487, %v768
        %v833 = vsub.f32 %v576, %v769
        %v834 = vsub.f32 %v489, %v770
        %v835 = vsub.f32 %v578, %v771
        %v836 = vmul.f32 %v644, 0.0019353072
        %v837 = vmul.f32 %v645, 0.0019353072
        %v838 = vmul.f32 %v646, 0.0019353072
        %v839 = vmul.f32 %v647, 0.0019353072
        %v840 = vmul.f32 %v648, 0.0019353072
        %v841 = vmul.f32 %v649, 0.0019353072
        %v842 = vmul.f32 %v650, 0.0019353072
        %v843 = vmul.f32 %v651, 0.0019353072
        %v844 = vmul.f32 %v652, 0.0019353072
        %v845 = vmul.f32 %v653, 0.0019353072
        %v846 = vmul.f32 %v654, 0.0019353072
        %v847 = vmul.f32 %v655, 0.0019353072
        %v848 = vmul.f32 %v656, 0.0019353072
        %v849 = vmul.f32 %v657, 0.0019353072
        %v850 = vmul.f32 %v658, 0.0019353072
        %v851 = vmul.f32 %v659, 0.0019353072
        %v852 = vmul.f32 %v660, 0.0019353072
        %v853 = vmul.f32 %v661, 0.0019353072
        %v854 = vmul.f32 %v662, 0.0019353072
        %v855 = vmul.f32 %v663, 0.0019353072
        %v856 = vmul.f32 %v664, 0.0019353072
        %v857 = vmul.f32 %v665, 0.0019353072
        %v858 = vmul.f32 %v666, 0.0019353072
        %v859 = vmul.f32 %v667, 0.0019353072
        %v860 = vmul.f32 %v668, 0.0019353072
        %v861 = vmul.f32 %v669, 0.0019353072
        %v862 = vmul.f32 %v670, 0.0019353072
        %v863 = vmul.f32 %v671, 0.0019353072
        %v864 = vmul.f32 %v672, 0.0019353072
        %v865 = vmul.f32 %v673, 0.0019353072
        %v866 = vmul.f32 %v674, 0.0019353072
        %v867 = vmul.f32 %v675, 0.0019353072
        %v868 = vmul.f32 %v676, 0.0019353072
        %v869 = vmul.f32 %v677, 0.0019353072
        %v870 = vmul.f32 %v678, 0.0019353072
        %v871 = vmul.f32 %v679, 0.0019353072
        %v872 = vmul.f32 %v680, 0.0019353072
        %v873 = vmul.f32 %v681, 0.0019353072
        %v874 = vmul.f32 %v682, 0.0019353072
        %v875 = vmul.f32 %v683, 0.0019353072
        %v876 = vmul.f32 %v684, 0.0019353072
        %v877 = vmul.f32 %v685, 0.0019353072
        %v878 = vmul.f32 %v686, 0.0019353072
        %v879 = vmul.f32 %v687, 0.0019353072
        %v880 = vmul.f32 %v688, 0.0019353072
        %v881 = vmul.f32 %v689, 0.0019353072
        %v882 = vmul.f32 %v690, 0.0019353072
        %v883 = vmul.f32 %v691, 0.0019353072
        %v884 = vmul.f32 %v692, 0.0019353072
        %v885 = vmul.f32 %v693, 0.0019353072
        %v886 = vmul.f32 %v694, 0.0019353072
        %v887 = vmul.f32 %v695, 0.0019353072
        %v888 = vmul.f32 %v696, 0.0019353072
        %v889 = vmul.f32 %v697, 0.0019353072
        %v890 = vmul.f32 %v698, 0.0019353072
        %v891 = vmul.f32 %v699, 0.0019353072
        %v892 = vmul.f32 %v700, 0.0019353072
        %v893 = vmul.f32 %v701, 0.0019353072
        %v894 = vmul.f32 %v702, 0.0019353072
        %v895 = vmul.f32 %v703, 0.0019353072
        %v896 = vmul.f32 %v704, 0.0019353072
        %v897 = vmul.f32 %v705, 0.0019353072
        %v898 = vmul.f32 %v706, 0.0019353072
        %v899 = vmul.f32 %v707, 0.0019353072
        %v900 = vsub.f32 %v772, %v836
        %v901 = vsub.f32 %v773, %v837
        %v902 = vsub.f32 %v774, %v838
        %v903 = vsub.f32 %v775, %v839
        %v904 = vsub.f32 %v776, %v840
        %v905 = vsub.f32 %v777, %v841
        %v906 = vsub.f32 %v778, %v842
        %v907 = vsub.f32 %v779, %v843
        %v908 = vsub.f32 %v780, %v844
        %v909 = vsub.f32 %v781, %v845
        %v910 = vsub.f32 %v782, %v846
        %v911 = vsub.f32 %v783, %v847
        %v912 = vsub.f32 %v784, %v848
        %v913 = vsub.f32 %v785, %v849
        %v914 = vsub.f32 %v786, %v850
        %v915 = vsub.f32 %v787, %v851
        %v916 = vsub.f32 %v788, %v852
        %v917 = vsub.f32 %v789, %v853
        %v918 = vsub.f32 %v790, %v854
        %v919 = vsub.f32 %v791, %v855
        %v920 = vsub.f32 %v792, %v856
        %v921 = vsub.f32 %v793, %v857
        %v922 = vsub.f32 %v794, %v858
        %v923 = vsub.f32 %v795, %v859
        %v924 = vsub.f32 %v796, %v860
        %v925 = vsub.f32 %v797, %v861
        %v926 = vsub.f32 %v798, %v862
        %v927 = vsub.f32 %v799, %v863
        %v928 = vsub.f32 %v800, %v864
        %v929 = vsub.f32 %v801, %v865
        %v930 = vsub.f32 %v802, %v866
        %v931 = vsub.f32 %v803, %v867
        %v932 = vsub.f32 %v804, %v868
        %v933 = vsub.f32 %v805, %v869
        %v934 = vsub.f32 %v806, %v870
        %v935 = vsub.f32 %v807, %v871
        %v936 = vsub.f32 %v808, %v872
        %v937 = vsub.f32 %v809, %v873
        %v938 = vsub.f32 %v810, %v874
        %v939 = vsub.f32 %v811, %v875
        %v940 = vsub.f32 %v812, %v876
        %v941 = vsub.f32 %v813, %v877
        %v942 = vsub.f32 %v814, %v878
        %v943 = vsub.f32 %v815, %v879
        %v944 = vsub.f32 %v816, %v880
        %v945 = vsub.f32 %v817, %v881
        %v946 = vsub.f32 %v818, %v882
        %v947 = vsub.f32 %v819, %v883
        %v948 = vsub.f32 %v820, %v884
        %v949 = vsub.f32 %v821, %v885
        %v950 = vsub.f32 %v822, %v886
        %v951 = vsub.f32 %v823, %v887
        %v952 = vsub.f32 %v824, %v888
        %v953 = vsub.f32 %v825, %v889
        %v954 = vsub.f32 %v826, %v890
        %v955 = vsub.f32 %v827, %v891
        %v956 = vsub.f32 %v828, %v892
        %v957 = vsub.f32 %v829, %v893
        %v958 = vsub.f32 %v830, %v894
        %v959 = vsub.f32 %v831, %v895
        %v960 = vsub.f32 %v832, %v896
        %v961 = vsub.f32 %v833, %v897
        %v962 = vsub.f32 %v834, %v898
        %v963 = vsub.f32 %v835, %v899
        %v964 = vmul.f32 %v900, %v900
        %v965 = vmul.f32 %v901, %v901
        %v966 = vmul.f32 %v902, %v902
        %v967 = vmul.f32 %v903, %v903
        %v968 = vmul.f32 %v904, %v904
        %v969 = vmul.f32 %v905, %v905
        %v970 = vmul.f32 %v906, %v906
        %v971 = vmul.f32 %v907, %v907
        %v972 = vmul.f32 %v908, %v908
        %v973 = vmul.f32 %v909, %v909
        %v974 = vmul.f32 %v910, %v910
        %v975 = vmul.f32 %v911, %v911
        %v976 = vmul.f32 %v912, %v912
        %v977 = vmul.f32 %v913, %v913
        %v978 = vmul.f32 %v914, %v914
        %v979 = vmul.f32 %v915, %v915
        %v980 = vmul.f32 %v916, %v916
        %v981 = vmul.f32 %v917, %v917
        %v982 = vmul.f32 %v918, %v918
        %v983 = vmul.f32 %v919, %v919
        %v984 = vmul.f32 %v920, %v920
        %v985 = vmul.f32 %v921, %v921
        %v986 = vmul.f32 %v922, %v922
        %v987 = vmul.f32 %v923, %v923
        %v988 = vmul.f32 %v924, %v924
        %v989 = vmul.f32 %v925, %v925
        %v990 = vmul.f32 %v926, %v926
        %v991 = vmul.f32 %v927, %v927
        %v992 = vmul.f32 %v928, %v928
        %v993 = vmul.f32 %v929, %v929
        %v994 = vmul.f32 %v930, %v930
        %v995 = vmul.f32 %v931, %v931
        %v996 = vmul.f32 %v932, %v932
        %v997 = vmul.f32 %v933, %v933
        %v998 = vmul.f32 %v934, %v934
        %v999 = vmul.f32 %v935, %v935
        %v1000 = vmul.f32 %v936, %v936
        %v1001 = vmul.f32 %v937, %v937
        %v1002 = vmul.f32 %v938, %v938
        %v1003 = vmul.f32 %v939, %v939
        %v1004 = vmul.f32 %v940, %v940
        %v1005 = vmul.f32 %v941, %v941
        %v1006 = vmul.f32 %v942, %v942
        %v1007 = vmul.f32 %v943, %v943
        %v1008 = vmul.f32 %v944, %v944
        %v1009 = vmul.f32 %v945, %v945
        %v1010 = vmul.f32 %v946, %v946
        %v1011 = vmul.f32 %v947, %v947
        %v1012 = vmul.f32 %v948, %v948
        %v1013 = vmul.f32 %v949, %v949
        %v1014 = vmul.f32 %v950, %v950
        %v1015 = vmul.f32 %v951, %v951
        %v1016 = vmul.f32 %v952, %v952
        %v1017 = vmul.f32 %v953, %v953
        %v1018 = vmul.f32 %v954, %v954
        %v1019 = vmul.f32 %v955, %v955
        %v1020 = vmul.f32 %v956, %v956
        %v1021 = vmul.f32 %v957, %v957
        %v1022 = vmul.f32 %v958, %v958
        %v1023 = vmul.f32 %v959, %v959
        %v1024 = vmul.f32 %v960, %v960
        %v1025 = vmul.f32 %v961, %v961
        %v1026 = vmul.f32 %v962, %v962
        %v1027 = vmul.f32 %v963, %v963
        %v1028 = vmul.f32 %v964, 1.6059044e-10
        %v1029 = vmul.f32 %v965, 1.6059044e-10
        %v1030 = vmul.f32 %v966, 1.6059044e-10
        %v1031 = vmul.f32 %v967, 1.6059044e-10
        %v1032 = vmul.f32 %v968, 1.6059044e-10
        %v1033 = vmul.f32 %v969, 1.6059044e-10
        %v1034 = vmul.f32 %v970, 1.6059044e-10
        %v1035 = vmul.f32 %v971, 1.6059044e-10
        %v1036 = vmul.f32 %v972, 1.6059044e-10
        %v1037 = vmul.f32 %v973, 1.6059044e-10
        %v1038 = vmul.f32 %v974, 1.6059044e-10
        %v1039 = vmul.f32 %v975, 1.6059044e-10
        %v1040 = vmul.f32 %v976, 1.6059044e-10
        %v1041 = vmul.f32 %v977, 1.6059044e-10
        %v1042 = vmul.f32 %v978, 1.6059044e-10
        %v1043 = vmul.f32 %v979, 1.6059044e-10
        %v1044 = vmul.f32 %v980, 1.6059044e-10
        %v1045 = vmul.f32 %v981, 1.6059044e-10
        %v1046 = vmul.f32 %v982, 1.6059044e-10
        %v1047 = vmul.f32 %v983, 1.6059044e-10
        %v1048 = vmul.f32 %v984, 1.6059044e-10
        %v1049 = vmul.f32 %v985, 1.6059044e-10
        %v1050 = vmul.f32 %v986, 1.6059044e-10
        %v1051 = vmul.f32 %v987, 1.6059044e-10
        %v1052 = vmul.f32 %v988, 1.6059044e-10
        %v1053 = vmul.f32 %v989, 1.6059044e-10
        %v1054 = vmul.f32 %v990, 1.6059044e-10
        %v1055 = vmul.f32 %v991, 1.6059044e-10
        %v1056 = vmul.f32 %v992, 1.6059044e-10
        %v1057 = vmul.f32 %v993, 1.6059044e-10
        %v1058 = vmul.f32 %v994, 1.6059044e-10
        %v1059 = vmul.f32 %v995, 1.6059044e-10
        %v1060 = vmul.f32 %v996, 1.6059044e-10
        %v1061 = vmul.f32 %v997, 1.6059044e-10
        %v1062 = vmul.f32 %v998, 1.6059044e-10
        %v1063 = vmul.f32 %v999, 1.6059044e-10
        %v1064 = vmul.f32 %v1000, 1.6059044e-10
        %v1065 = vmul.f32 %v1001, 1.6059044e-10
        %v1066 = vmul.f32 %v1002, 1.6059044e-10
        %v1067 = vmul.f32 %v1003, 1.6059044e-10
        %v1068 = vmul.f32 %v1004, 1.6059044e-10
        %v1069 = vmul.f32 %v1005, 1.6059044e-10
        %v1070 = vmul.f32 %v1006, 1.6059044e-10
        %v1071 = vmul.f32 %v1007, 1.6059044e-10
        %v1072 = vmul.f32 %v1008, 1.6059044e-10
        %v1073 = vmul.f32 %v1009, 1.6059044e-10
        %v1074 = vmul.f32 %v1010, 1.6059044e-10
        %v1075 = vmul.f32 %v1011, 1.6059044e-10
        %v1076 = vmul.f32 %v1012, 1.6059044e-10
        %v1077 = vmul.f32 %v1013, 1.6059044e-10
        %v1078 = vmul.f32 %v1014, 1.6059044e-10
        %v1079 = vmul.f32 %v1015, 1.6059044e-10
        %v1080 = vmul.f32 %v1016, 1.6059044e-10
        %v1081 = vmul.f32 %v1017, 1.6059044e-10
        %v1082 = vmul.f32 %v1018, 1.6059044e-10
        %v1083 = vmul.f32 %v1019, 1.6059044e-10
        %v1084 = vmul.f32 %v1020, 1.6059044e-10
        %v1085 = vmul.f32 %v1021, 1.6059044e-10
        %v1086 = vmul.f32 %v1022, 1.6059044e-10
        %v1087 = vmul.f32 %v1023, 1.6059044e-10
        %v1088 = vmul.f32 %v1024, 1.6059044e-10
        %v1089 = vmul.f32 %v1025, 1.6059044e-10
        %v1090 = vmul.f32 %v1026, 1.6059044e-10
        %v1091 = vmul.f32 %v1027, 1.6059044e-10
        %v1092 = vadd.f32 %v1028, -2.5052108e-08
        %v1093 = vadd.f32 %v1029, -2.5052108e-08
        %v1094 = vadd.f32 %v1030, -2.5052108e-08
        %v1095 = vadd.f32 %v1031, -2.5052108e-08
        %v1096 = vadd.f32 %v1032, -2.5052108e-08
        %v1097 = vadd.f32 %v1033, -2.5052108e-08
        %v1098 = vadd.f32 %v1034, -2.5052108e-08
        %v1099 = vadd.f32 %v1035, -2.5052108e-08
        %v1100 = vadd.f32 %v1036, -2.5052108e-08
        %v1101 = vadd.f32 %v1037, -2.5052108e-08
        %v1102 = vadd.f32 %v1038, -2.5052108e-08
        %v1103 = vadd.f32 %v1039, -2.5052108e-08
        %v1104 = vadd.f32 %v1040, -2.5052108e-08
        %v1105 = vadd.f32 %v1041, -2.5052108e-08
        %v1106 = vadd.f32 %v1042, -2.5052108e-08
        %v1107 = vadd.f32 %v1043, -2.5052108e-08
        %v1108 = vadd.f32 %v1044, -2.5052108e-08
        %v1109 = vadd.f32 %v1045, -2.5052108e-08
        %v1110 = vadd.f32 %v1046, -2.5052108e-08
        %v1111 = vadd.f32 %v1047, -2.5052108e-08
        %v1112 = vadd.f32 %v1048, -2.5052108e-08
        %v1113 = vadd.f32 %v1049, -2.5052108e-08
        %v1114 = vadd.f32 %v1050, -2.5052108e-08
        %v1115 = vadd.f32 %v1051, -2.5052108e-08
        %v1116 = vadd.f32 %v1052, -2.5052108e-08
        %v1117 = vadd.f32 %v1053, -2.5052108e-08
        %v1118 = vadd.f32 %v1054, -2.5052108e-08
        %v1119 = vadd.f32 %v1055, -2.5052108e-08
        %v1120 = vadd.f32 %v1056, -2.5052108e-08
        %v1121 = vadd.f32 %v1057, -2.5052108e-08
        %v1122 = vadd.f32 %v1058, -2.5052108e-08
        %v1123 = vadd.f32 %v1059, -2.5052108e-08
        %v1124 = vadd.f32 %v1060, -2.5052108e-08
        %v1125 = vadd.f32 %v1061, -2.5052108e-08
        %v1126 = vadd.f32 %v1062, -2.5052108e-08
        %v1127 = vadd.f32 %v1063, -2.5052108e-08
        %v1128 = vadd.f32 %v1064, -2.5052108e-08
        %v1129 = vadd.f32 %v1065, -2.5052108e-08
        %v1130 = vadd.f32 %v1066, -2.5052108e-08
        %v1131 = vadd.f32 %v1067, -2.5052108e-08
        %v1132 = vadd.f32 %v1068, -2.5052108e-08
        %v1133 = vadd.f32 %v1069, -2.5052108e-08
        %v1134 = vadd.f32 %v1070, -2.5052108e-08
        %v1135 = vadd.f32 %v1071, -2.5052108e-08
        %v1136 = vadd.f32 %v1072, -2.5052108e-08
        %v1137 = vadd.f32 %v1073, -2.5052108e-08
        %v1138 = vadd.f32 %v1074, -2.5052108e-08
        %v1139 = vadd.f32 %v1075, -2.5052108e-08
        %v1140 = vadd.f32 %v1076, -2.5052108e-08
        %v1141 = vadd.f32 %v1077, -2.5052108e-08
        %v1142 = vadd.f32 %v1078, -2.5052108e-08
        %v1143 = vadd.f32 %v1079, -2.5052108e-08
        %v1144 = vadd.f32 %v1080, -2.5052108e-08
        %v1145 = vadd.f32 %v1081, -2.5052108e-08
        %v1146 = vadd.f32 %v1082, -2.5052108e-08
        %v1147 = vadd.f32 %v1083, -2.5052108e-08
        %v1148 = vadd.f32 %v1084, -2.5052108e-08
        %v1149 = vadd.f32 %v1085, -2.5052108e-08
        %v1150 = vadd.f32 %v1086, -2.5052108e-08
        %v1151 = vadd.f32 %v1087, -2.5052108e-08
        %v1152 = vadd.f32 %v1088, -2.5052108e-08
        %v1153 = vadd.f32 %v1089, -2.5052108e-08
        %v1154 = vadd.f32 %v1090, -2.5052108e-08
        %v1155 = vadd.f32 %v1091, -2.5052108e-08
        %v1156 = vmul.f32 %v1092, %v964
        %v1157 = vmul.f32 %v1093, %v965
        %v1158 = vmul.f32 %v1094, %v966
        %v1159 = vmul.f32 %v1095, %v967
        %v1160 = vmul.f32 %v1096, %v968
        %v1161 = vmul.f32 %v1097, %v969
        %v1162 = vmul.f32 %v1098, %v970
        %v1163 = vmul.f32 %v1099, %v971
        %v1164 = vmul.f32 %v1100, %v972
        %v1165 = vmul.f32 %v1101, %v973
        %v1166 = vmul.f32 %v1102, %v974
        %v1167 = vmul.f32 %v1103, %v975
        %v1168 = vmul.f32 %v1104, %v976
        %v1169 = vmul.f32 %v1105, %v977
        %v1170 = vmul.f32 %v1106, %v978
        %v1171 = vmul.f32 %v1107, %v979
        %v1172 = vmul.f32 %v1108, %v980
        %v1173 = vmul.f32 %v1109, %v981
        %v1174 = vmul.f32 %v1110, %v982
        %v1175 = vmul.f32 %v1111, %v983
        %v1176 = vmul.f32 %v1112, %v984
        %v1177 = vmul.f32 %v1113, %v985
        %v1178 = vmul.f32 %v1114, %v986
        %v1179 = vmul.f32 %v1115, %v987
        %v1180 = vmul.f32 %v1116, %v988
        %v1181 = vmul.f32 %v1117, %v989
        %v1182 = vmul.f32 %v1118, %v990
        %v1183 = vmul.f32 %v1119, %v991
        %v1184 = vmul.f32 %v1120, %v992
        %v1185 = vmul.f32 %v1121, %v993
        %v1186 = vmul.f32 %v1122, %v994
        %v1187 = vmul.f32 %v1123, %v995
        %v1188 = vmul.f32 %v1124, %v996
        %v1189 = vmul.f32 %v1125, %v997
        %v1190 = vmul.f32 %v1126, %v998
        %v1191 = vmul.f32 %v1127, %v999
        %v1192 = vmul.f32 %v1128, %v1000
        %v1193 = vmul.f32 %v1129, %v1001
        %v1194 = vmul.f32 %v1130, %v1002
        %v1195 = vmul.f32 %v1131, %v1003
        %v1196 = vmul.f32 %v1132, %v1004
        %v1197 = vmul.f32 %v1133, %v1005
        %v1198 = vmul.f32 %v1134, %v1006
        %v1199 = vmul.f32 %v1135, %v1007
        %v1200 = vmul.f32 %v1136, %v1008
        %v1201 = vmul.f32 %v1137, %v1009
        %v1202 = vmul.f32 %v1138, %v1010
        %v1203 = vmul.f32 %v1139, %v1011
        %v1204 = vmul.f32 %v1140, %v1012
        %v1205 = vmul.f32 %v1141, %v1013
        %v1206 = vmul.f32 %v1142, %v1014
        %v1207 = vmul.f32 %v1143, %v1015
        %v1208 = vmul.f32 %v1144, %v1016
        %v1209 = vmul.f32 %v1145, %v1017
        %v1210 = vmul.f32 %v1146, %v1018
        %v1211 = vmul.f32 %v1147, %v1019
        %v1212 = vmul.f32 %v1148, %v1020
        %v1213 = vmul.f32 %v1149, %v1021
        %v1214 = vmul.f32 %v1150, %v1022
        %v1215 = vmul.f32 %v1151, %v1023
        %v1216 = vmul.f32 %v1152, %v1024
        %v1217 = vmul.f32 %v1153, %v1025
        %v1218 = vmul.f32 %v1154, %v1026
        %v1219 = vmul.f32 %v1155, %v1027
        %v1220 = vadd.f32 %v1156, 2.7557319e-06
        %v1221 = vadd.f32 %v1157, 2.7557319e-06
        %v1222 = vadd.f32 %v1158, 2.7557319e-06
        %v1223 = vadd.f32 %v1159, 2.7557319e-06
        %v1224 = vadd.f32 %v1160, 2.7557319e-06
        %v1225 = vadd.f32 %v1161, 2.7557319e-06
        %v1226 = vadd.f32 %v1162, 2.7557319e-06
        %v1227 = vadd.f32 %v1163, 2.7557319e-06
        %v1228 = vadd.f32 %v1164, 2.7557319e-06
        %v1229 = vadd.f32 %v1165, 2.7557319e-06
        %v1230 = vadd.f32 %v1166, 2.7557319e-06
        %v1231 = vadd.f32 %v1167, 2.7557319e-06
        %v1232 = vadd.f32 %v1168, 2.7557319e-06
        %v1233 = vadd.f32 %v1169, 2.7557319e-06
        %v1234 = vadd.f32 %v1170, 2.7557319e-06
        %v1235 = vadd.f32 %v1171, 2.7557319e-06
        %v1236 = vadd.f32 %v1172, 2.7557319e-06
        %v1237 = vadd.f32 %v1173, 2.7557319e-06
        %v1238 = vadd.f32 %v1174, 2.7557319e-06
        %v1239 = vadd.f32 %v1175, 2.7557319e-06
        %v1240 = vadd.f32 %v1176, 2.7557319e-06
        %v1241 = vadd.f32 %v1177, 2.7557319e-06
        %v1242 = vadd.f32 %v1178, 2.7557319e-06
        %v1243 = vadd.f32 %v1179, 2.7557319e-06
        %v1244 = vadd.f32 %v1180, 2.7557319e-06
        %v1245 = vadd.f32 %v1181, 2.7557319e-06
        %v1246 = vadd.f32 %v1182, 2.7557319e-06
        %v1247 = vadd.f32 %v1183, 2.7557319e-06
        %v1248 = vadd.f32 %v1184, 2.7557319e-06
        %v1249 = vadd.f32 %v1185, 2.7557319e-06
        %v1250 = vadd.f32 %v1186, 2.7557319e-06
        %v1251 = vadd.f32 %v1187, 2.7557319e-06
        %v1252 = vadd.f32 %v1188, 2.7557319e-06
        %v1253 = vadd.f32 %v1189, 2.7557319e-06
        %v1254 = vadd.f32 %v1190, 2.7557319e-06
        %v1255 = vadd.f32 %v1191, 2.7557319e-06
        %v1256 = vadd.f32 %v1192, 2.7557319e-06
        %v1257 = vadd.f32 %v1193, 2.7557319e-06
        %v1258 = vadd.f32 %v1194, 2.7557319e-06
        %v1259 = vadd.f32 %v1195, 2.7557319e-06
        %v1260 = vadd.f32 %v1196, 2.7557319e-06
        %v1261 = vadd.f32 %v1197, 2.7557319e-06
        %v1262 = vadd.f32 %v1198, 2.7557319e-06
        %v1263 = vadd.f32 %v1199, 2.7557319e-06
        %v1264 = vadd.f32 %v1200, 2.7557319e-06
        %v1265 = vadd.f32 %v1201, 2.7557319e-06
        %v1266 = vadd.f32 %v1202, 2.7557319e-06
        %v1267 = vadd.f32 %v1203, 2.7557319e-06
        %v1268 = vadd.f32 %v1204, 2.7557319e-06
        %v1269 = vadd.f32 %v1205, 2.7557319e-06
        %v1270 = vadd.f32 %v1206, 2.7557319e-06
        %v1271 = vadd.f32 %v1207, 2.7557319e-06
        %v1272 = vadd.f32 %v1208, 2.7557319e-06
        %v1273 = vadd.f32 %v1209, 2.7557319e-06
        %v1274 = vadd.f32 %v1210, 2.7557319e-06
        %v1275 = vadd.f32 %v1211, 2.7557319e-06
        %v1276 = vadd.f32 %v1212, 2.7557319e-06
        %v1277 = vadd.f32 %v1213, 2.7557319e-06
        %v1278 = vadd.f32 %v1214, 2.7557319e-06
        %v1279 = vadd.f32 %v1215, 2.7557319e-06
        %v1280 = vadd.f32 %v1216, 2.7557319e-06
        %v1281 = vadd.f32 %v1217, 2.7557319e-06
        %v1282 = vadd.f32 %v1218, 2.7557319e-06
        %v1283 = vadd.f32 %v1219, 2.7557319e-06
        %v1284 = vmul.f32 %v1220, %v964
        %v1285 = vmul.f32 %v1221, %v965
        %v1286 = vmul.f32 %v1222, %v966
        %v1287 = vmul.f32 %v1223, %v967
        %v1288 = vmul.f32 %v1224, %v968
        %v1289 = vmul.f32 %v1225, %v969
        %v1290 = vmul.f32 %v1226, %v970
        %v1291 = vmul.f32 %v1227, %v971
        %v1292 = vmul.f32 %v1228, %v972
        %v1293 = vmul.f32 %v1229, %v973
        %v1294 = vmul.f32 %v1230, %v974
        %v1295 = vmul.f32 %v1231, %v975
        %v1296 = vmul.f32 %v1232, %v976
        %v1297 = vmul.f32 %v1233, %v977
        %v1298 = vmul.f32 %v1234, %v978
        %v1299 = vmul.f32 %v1235, %v979
        %v1300 = vmul.f32 %v1236, %v980
        %v1301 = vmul.f32 %v1237, %v981
        %v1302 = vmul.f32 %v1238, %v982
        %v1303 = vmul.f32 %v1239, %v983
        %v1304 = vmul.f32 %v1240, %v984
        %v1305 = vmul.f32 %v1241, %v985
        %v1306 = vmul.f32 %v1242, %v986
        %v1307 = vmul.f32 %v1243, %v987
        %v1308 = vmul.f32 %v1244, %v988
        %v1309 = vmul.f32 %v1245, %v989
        %v1310 = vmul.f32 %v1246, %v990
        %v1311 = vmul.f32 %v1247, %v991
        %v1312 = vmul.f32 %v1248, %v992
        %v1313 = vmul.f32 %v1249, %v993
        %v1314 = vmul.f32 %v1250, %v994
        %v1315 = vmul.f32 %v1251, %v995
        %v1316 = vmul.f32 %v1252, %v996
        %v1317 = vmul.f32 %v1253, %v997
        %v1318 = vmul.f32 %v1254, %v998
        %v1319 = vmul.f32 %v1255, %v999
        %v1320 = vmul.f32 %v1256, %v1000
        %v1321 = vmul.f32 %v1257, %v1001
        %v1322 = vmul.f32 %v1258, %v1002
        %v1323 = vmul.f32 %v1259, %v1003
        %v1324 = vmul.f32 %v1260, %v1004
        %v1325 = vmul.f32 %v1261, %v1005
        %v1326 = vmul.f32 %v1262, %v1006
        %v1327 = vmul.f32 %v1263, %v1007
        %v1328 = vmul.f32 %v1264, %v1008
        %v1329 = vmul.f32 %v1265, %v1009
        %v1330 = vmul.f32 %v1266, %v1010
        %v1331 = vmul.f32 %v1267, %v1011
        %v1332 = vmul.f32 %v1268, %v1012
        %v1333 = vmul.f32 %v1269, %v1013
        %v1334 = vmul.f32 %v1270, %v1014
        %v1335 = vmul.f32 %v1271, %v1015
        %v1336 = vmul.f32 %v1272, %v1016
        %v1337 = vmul.f32 %v1273, %v1017
        %v1338 = vmul.f32 %v1274, %v1018
        %v1339 = vmul.f32 %v1275, %v1019
        %v1340 = vmul.f32 %v1276, %v1020
        %v1341 = vmul.f32 %v1277, %v1021
        %v1342 = vmul.f32 %v1278, %v1022
        %v1343 = vmul.f32 %v1279, %v1023
        %v1344 = vmul.f32 %v1280, %v1024
        %v1345 = vmul.f32 %v1281, %v1025
        %v1346 = vmul.f32 %v1282, %v1026
        %v1347 = vmul.f32 %v1283, %v1027
        %v1348 = vadd.f32 %v1284, -0.0001984127
        %v1349 = vadd.f32 %v1285, -0.0001984127
        %v1350 = vadd.f32 %v1286, -0.0001984127
        %v1351 = vadd.f32 %v1287, -0.0001984127
        %v1352 = vadd.f32 %v1288, -0.0001984127
        %v1353 = vadd.f32 %v1289, -0.0001984127
        %v1354 = vadd.f32 %v1290, -0.0001984127
        %v1355 = vadd.f32 %v1291, -0.0001984127
        %v1356 = vadd.f32 %v1292, -0.0001984127
        %v1357 = vadd.f32 %v1293, -0.0001984127
        %v1358 = vadd.f32 %v1294, -0.0001984127
        %v1359 = vadd.f32 %v1295, -0.0001984127
        %v1360 = vadd.f32 %v1296, -0.0001984127
        %v1361 = vadd.f32 %v1297, -0.0001984127
        %v1362 = vadd.f32 %v1298, -0.0001984127
        %v1363 = vadd.f32 %v1299, -0.0001984127
        %v1364 = vadd.f32 %v1300, -0.0001984127
        %v1365 = vadd.f32 %v1301, -0.0001984127
        %v1366 = vadd.f32 %v1302, -0.0001984127
        %v1367 = vadd.f32 %v1303, -0.0001984127
        %v1368 = vadd.f32 %v1304, -0.0001984127
        %v1369 = vadd.f32 %v1305, -0.0001984127
        %v1370 = vadd.f32 %v1306, -0.0001984127
        %v1371 = vadd.f32 %v1307, -0.0001984127
        %v1372 = vadd.f32 %v1308, -0.0001984127
        %v1373 = vadd.f32 %v1309, -0.0001984127
        %v1374 = vadd.f32 %v1310, -0.0001984127
        %v1375 = vadd.f32 %v1311, -0.0001984127
        %v1376 = vadd.f32 %v1312, -0.0001984127
        %v1377 = vadd.f32 %v1313, -0.0001984127
        %v1378 = vadd.f32 %v1314, -0.0001984127
        %v1379 = vadd.f32 %v1315, -0.0001984127
        %v1380 = vadd.f32 %v1316, -0.0001984127
        %v1381 = vadd.f32 %v1317, -0.0001984127
        %v1382 = vadd.f32 %v1318, -0.0001984127
        %v1383 = vadd.f32 %v1319, -0.0001984127
        %v1384 = vadd.f32 %v1320, -0.0001984127
        %v1385 = vadd.f32 %v1321, -0.0001984127
        %v1386 = vadd.f32 %v1322, -0.0001984127
        %v1387 = vadd.f32 %v1323, -0.0001984127
        %v1388 = vadd.f32 %v1324, -0.0001984127
        %v1389 = vadd.f32 %v1325, -0.0001984127
        %v1390 = vadd.f32 %v1326, -0.0001984127
        %v1391 = vadd.f32 %v1327, -0.0001984127
        %v1392 = vadd.f32 %v1328, -0.0001984127
        %v1393 = vadd.f32 %v1329, -0.0001984127
        %v1394 = vadd.f32 %v1330, -0.0001984127
        %v1395 = vadd.f32 %v1331, -0.0001984127
        %v1396 = vadd.f32 %v1332, -0.0001984127
        %v1397 = vadd.f32 %v1333, -0.0001984127
        %v1398 = vadd.f32 %v1334, -0.0001984127
        %v1399 = vadd.f32 %v1335, -0.0001984127
        %v1400 = vadd.f32 %v1336, -0.0001984127
        %v1401 = vadd.f32 %v1337, -0.0001984127
        %v1402 = vadd.f32 %v1338, -0.0001984127
        %v1403 = vadd.f32 %v1339, -0.0001984127
        %v1404 = vadd.f32 %v1340, -0.0001984127
        %v1405 = vadd.f32 %v1341, -0.0001984127
        %v1406 = vadd.f32 %v1342, -0.0001984127
        %v1407 = vadd.f32 %v1343, -0.0001984127
        %v1408 = vadd.f32 %v1344, -0.0001984127
        %v1409 = vadd.f32 %v1345, -0.0001984127
        %v1410 = vadd.f32 %v1346, -0.0001984127
        %v1411 = vadd.f32 %v1347, -0.0001984127
        %v1412 = vmul.f32 %v1348, %v964
        %v1413 = vmul.f32 %v1349, %v965
        %v1414 = vmul.f32 %v1350, %v966
        %v1415 = vmul.f32 %v1351, %v967
        %v1416 = vmul.f32 %v1352, %v968
        %v1417 = vmul.f32 %v1353, %v969
        %v1418 = vmul.f32 %v1354, %v970
        %v1419 = vmul.f32 %v1355, %v971
        %v1420 = vmul.f32 %v1356, %v972
        %v1421 = vmul.f32 %v1357, %v973
        %v1422 = vmul.f32 %v1358, %v974
        %v1423 = vmul.f32 %v1359, %v975
        %v1424 = vmul.f32 %v1360, %v976
        %v1425 = vmul.f32 %v1361, %v977
        %v1426 = vmul.f32 %v1362, %v978
        %v1427 = vmul.f32 %v1363, %v979
        %v1428 = vmul.f32 %v1364, %v980
        %v1429 = vmul.f32 %v1365, %v981
        %v1430 = vmul.f32 %v1366, %v982
        %v1431 = vmul.f32 %v1367, %v983
        %v1432 = vmul.f32 %v1368, %v984
        %v1433 = vmul.f32 %v1369, %v985
        %v1434 = vmul.f32 %v1370, %v986
        %v1435 = vmul.f32 %v1371, %v987
        %v1436 = vmul.f32 %v1372, %v988
        %v1437 = vmul.f32 %v1373, %v989
        %v1438 = vmul.f32 %v1374, %v990
        %v1439 = vmul.f32 %v1375, %v991
        %v1440 = vmul.f32 %v1376, %v992
        %v1441 = vmul.f32 %v1377, %v993
        %v1442 = vmul.f32 %v1378, %v994
        %v1443 = vmul.f32 %v1379, %v995
        %v1444 = vmul.f32 %v1380, %v996
        %v1445 = vmul.f32 %v1381, %v997
        %v1446 = vmul.f32 %v1382, %v998
        %v1447 = vmul.f32 %v1383, %v999
        %v1448 = vmul.f32 %v1384, %v1000
        %v1449 = vmul.f32 %v1385, %v1001
        %v1450 = vmul.f32 %v1386, %v1002
        %v1451 = vmul.f32 %v1387, %v1003
        %v1452 = vmul.f32 %v1388, %v1004
        %v1453 = vmul.f32 %v1389, %v1005
        %v1454 = vmul.f32 %v1390, %v1006
        %v1455 = vmul.f32 %v1391, %v1007
        %v1456 = vmul.f32 %v1392, %v1008
        %v1457 = vmul.f32 %v1393, %v1009
        %v1458 = vmul.f32 %v1394, %v1010
        %v1459 = vmul.f32 %v1395, %v1011
        %v1460 = vmul.f32 %v1396, %v1012
        %v1461 = vmul.f32 %v1397, %v1013
        %v1462 = vmul.f32 %v1398, %v1014
        %v1463 = vmul.f32 %v1399, %v1015
        %v1464 = vmul.f32 %v1400, %v1016
        %v1465 = vmul.f32 %v1401, %v1017
        %v1466 = vmul.f32 %v1402, %v1018
        %v1467 = vmul.f32 %v1403, %v1019
        %v1468 = vmul.f32 %v1404, %v1020
        %v1469 = vmul.f32 %v1405, %v1021
        %v1470 = vmul.f32 %v1406, %v1022
        %v1471 = vmul.f32 %v1407, %v1023
        %v1472 = vmul.f32 %v1408, %v1024
        %v1473 = vmul.f32 %v1409, %v1025
        %v1474 = vmul.f32 %v1410, %v1026
        %v1475 = vmul.f32 %v1411, %v1027
        %v1476 = vadd.f32 %v1412, 0.008333334
        %v1477 = vadd.f32 %v1413, 0.008333334
        %v1478 = vadd.f32 %v1414, 0.008333334
        %v1479 = vadd.f32 %v1415, 0.008333334
        %v1480 = vadd.f32 %v1416, 0.008333334
        %v1481 = vadd.f32 %v1417, 0.008333334
        %v1482 = vadd.f32 %v1418, 0.008333334
        %v1483 = vadd.f32 %v1419, 0.008333334
        %v1484 = vadd.f32 %v1420, 0.008333334
        %v1485 = vadd.f32 %v1421, 0.008333334
        %v1486 = vadd.f32 %v1422, 0.008333334
        %v1487 = vadd.f32 %v1423, 0.008333334
        %v1488 = vadd.f32 %v1424, 0.008333334
        %v1489 = vadd.f32 %v1425, 0.008333334
        %v1490 = vadd.f32 %v1426, 0.008333334
        %v1491 = vadd.f32 %v1427, 0.008333334
        %v1492 = vadd.f32 %v1428, 0.008333334
        %v1493 = vadd.f32 %v1429, 0.008333334
        %v1494 = vadd.f32 %v1430, 0.008333334
        %v1495 = vadd.f32 %v1431, 0.008333334
        %v1496 = vadd.f32 %v1432, 0.008333334
        %v1497 = vadd.f32 %v1433, 0.008333334
        %v1498 = vadd.f32 %v1434, 0.008333334
        %v1499 = vadd.f32 %v1435, 0.008333334
        %v1500 = vadd.f32 %v1436, 0.008333334
        %v1501 = vadd.f32 %v1437, 0.008333334
        %v1502 = vadd.f32 %v1438, 0.008333334
        %v1503 = vadd.f32 %v1439, 0.008333334
        %v1504 = vadd.f32 %v1440, 0.008333334
        %v1505 = vadd.f32 %v1441, 0.008333334
        %v1506 = vadd.f32 %v1442, 0.008333334
        %v1507 = vadd.f32 %v1443, 0.008333334
        %v1508 = vadd.f32 %v1444, 0.008333334
        %v1509 = vadd.f32 %v1445, 0.008333334
        %v1510 = vadd.f32 %v1446, 0.008333334
        %v1511 = vadd.f32 %v1447, 0.008333334
        %v1512 = vadd.f32 %v1448, 0.008333334
        %v1513 = vadd.f32 %v1449, 0.008333334
        %v1514 = vadd.f32 %v1450, 0.008333334
        %v1515 = vadd.f32 %v1451, 0.008333334
        %v1516 = vadd.f32 %v1452, 0.008333334
        %v1517 = vadd.f32 %v1453, 0.008333334
        %v1518 = vadd.f32 %v1454, 0.008333334
        %v1519 = vadd.f32 %v1455, 0.008333334
        %v1520 = vadd.f32 %v1456, 0.008333334
        %v1521 = vadd.f32 %v1457, 0.008333334
        %v1522 = vadd.f32 %v1458, 0.008333334
        %v1523 = vadd.f32 %v1459, 0.008333334
        %v1524 = vadd.f32 %v1460, 0.008333334
        %v1525 = vadd.f32 %v1461, 0.008333334
        %v1526 = vadd.f32 %v1462, 0.008333334
        %v1527 = vadd.f32 %v1463, 0.008333334
        %v1528 = vadd.f32 %v1464, 0.008333334
        %v1529 = vadd.f32 %v1465, 0.008333334
        %v1530 = vadd.f32 %v1466, 0.008333334
        %v1531 = vadd.f32 %v1467, 0.008333334
        %v1532 = vadd.f32 %v1468, 0.008333334
        %v1533 = vadd.f32 %v1469, 0.008333334
        %v1534 = vadd.f32 %v1470, 0.008333334
        %v1535 = vadd.f32 %v1471, 0.008333334
        %v1536 = vadd.f32 %v1472, 0.008333334
        %v1537 = vadd.f32 %v1473, 0.008333334
        %v1538 = vadd.f32 %v1474, 0.008333334
        %v1539 = vadd.f32 %v1475, 0.008333334
        %v1540 = vmul.f32 %v1476, %v964
        %v1541 = vmul.f32 %v1477, %v965
        %v1542 = vmul.f32 %v1478, %v966
        %v1543 = vmul.f32 %v1479, %v967
        %v1544 = vmul.f32 %v1480, %v968
        %v1545 = vmul.f32 %v1481, %v969
        %v1546 = vmul.f32 %v1482, %v970
        %v1547 = vmul.f32 %v1483, %v971
        %v1548 = vmul.f32 %v1484, %v972
        %v1549 = vmul.f32 %v1485, %v973
        %v1550 = vmul.f32 %v1486, %v974
        %v1551 = vmul.f32 %v1487, %v975
        %v1552 = vmul.f32 %v1488, %v976
        %v1553 = vmul.f32 %v1489, %v977
        %v1554 = vmul.f32 %v1490, %v978
        %v1555 = vmul.f32 %v1491, %v979
        %v1556 = vmul.f32 %v1492, %v980
        %v1557 = vmul.f32 %v1493, %v981
        %v1558 = vmul.f32 %v1494, %v982
        %v1559 = vmul.f32 %v1495, %v983
        %v1560 = vmul.f32 %v1496, %v984
        %v1561 = vmul.f32 %v1497, %v985
        %v1562 = vmul.f32 %v1498, %v986
        %v1563 = vmul.f32 %v1499, %v987
        %v1564 = vmul.f32 %v1500, %v988
        %v1565 = vmul.f32 %v1501, %v989
        %v1566 = vmul.f32 %v1502, %v990
        %v1567 = vmul.f32 %v1503, %v991
        %v1568 = vmul.f32 %v1504, %v992
        %v1569 = vmul.f32 %v1505, %v993
        %v1570 = vmul.f32 %v1506, %v994
        %v1571 = vmul.f32 %v1507, %v995
        %v1572 = vmul.f32 %v1508, %v996
        %v1573 = vmul.f32 %v1509, %v997
        %v1574 = vmul.f32 %v1510, %v998
        %v1575 = vmul.f32 %v1511, %v999
        %v1576 = vmul.f32 %v1512, %v1000
        %v1577 = vmul.f32 %v1513, %v1001
        %v1578 = vmul.f32 %v1514, %v1002
        %v1579 = vmul.f32 %v1515, %v1003
        %v1580 = vmul.f32 %v1516, %v1004
        %v1581 = vmul.f32 %v1517, %v1005
        %v1582 = vmul.f32 %v1518, %v1006
        %v1583 = vmul.f32 %v1519, %v1007
        %v1584 = vmul.f32 %v1520, %v1008
        %v1585 = vmul.f32 %v1521, %v1009
        %v1586 = vmul.f32 %v1522, %v1010
        %v1587 = vmul.f32 %v1523, %v1011
        %v1588 = vmul.f32 %v1524, %v1012
        %v1589 = vmul.f32 %v1525, %v1013
        %v1590 = vmul.f32 %v1526, %v1014
        %v1591 = vmul.f32 %v1527, %v1015
        %v1592 = vmul.f32 %v1528, %v1016
        %v1593 = vmul.f32 %v1529, %v1017
        %v1594 = vmul.f32 %v1530, %v1018
        %v1595 = vmul.f32 %v1531, %v1019
        %v1596 = vmul.f32 %v1532, %v1020
        %v1597 = vmul.f32 %v1533, %v1021
        %v1598 = vmul.f32 %v1534, %v1022
        %v1599 = vmul.f32 %v1535, %v1023
        %v1600 = vmul.f32 %v1536, %v1024
        %v1601 = vmul.f32 %v1537, %v1025
        %v1602 = vmul.f32 %v1538, %v1026
        %v1603 = vmul.f32 %v1539, %v1027
        %v1604 = vadd.f32 %v1540, -0.16666667
        %v1605 = vadd.f32 %v1541, -0.16666667
        %v1606 = vadd.f32 %v1542, -0.16666667
        %v1607 = vadd.f32 %v1543, -0.16666667
        %v1608 = vadd.f32 %v1544, -0.16666667
        %v1609 = vadd.f32 %v1545, -0.16666667
        %v1610 = vadd.f32 %v1546, -0.16666667
        %v1611 = vadd.f32 %v1547, -0.16666667
        %v1612 = vadd.f32 %v1548, -0.16666667
        %v1613 = vadd.f32 %v1549, -0.16666667
        %v1614 = vadd.f32 %v1550, -0.16666667
        %v1615 = vadd.f32 %v1551, -0.16666667
        %v1616 = vadd.f32 %v1552, -0.16666667
        %v1617 = vadd.f32 %v1553, -0.16666667
        %v1618 = vadd.f32 %v1554, -0.16666667
        %v1619 = vadd.f32 %v1555, -0.16666667
        %v1620 = vadd.f32 %v1556, -0.16666667
        %v1621 = vadd.f32 %v1557, -0.16666667
        %v1622 = vadd.f32 %v1558, -0.16666667
        %v1623 = vadd.f32 %v1559, -0.16666667
        %v1624 = vadd.f32 %v1560, -0.16666667
        %v1625 = vadd.f32 %v1561, -0.16666667
        %v1626 = vadd.f32 %v1562, -0.16666667
        %v1627 = vadd.f32 %v1563, -0.16666667
        %v1628 = vadd.f32 %v1564, -0.16666667
        %v1629 = vadd.f32 %v1565, -0.16666667
        %v1630 = vadd.f32 %v1566, -0.16666667
        %v1631 = vadd.f32 %v1567, -0.16666667
        %v1632 = vadd.f32 %v1568, -0.16666667
        %v1633 = vadd.f32 %v1569, -0.16666667
        %v1634 = vadd.f32 %v1570, -0.16666667
        %v1635 = vadd.f32 %v1571, -0.16666667
        %v1636 = vadd.f32 %v1572, -0.16666667
        %v1637 = vadd.f32 %v1573, -0.16666667
        %v1638 = vadd.f32 %v1574, -0.16666667
        %v1639 = vadd.f32 %v1575, -0.16666667
        %v1640 = vadd.f32 %v1576, -0.16666667
        %v1641 = vadd.f32 %v1577, -0.16666667
        %v1642 = vadd.f32 %v1578, -0.16666667
        %v1643 = vadd.f32 %v1579, -0.16666667
        %v1644 = vadd.f32 %v1580, -0.16666667
        %v1645 = vadd.f32 %v1581, -0.16666667
        %v1646 = vadd.f32 %v1582, -0.16666667
        %v1647 = vadd.f32 %v1583, -0.16666667
        %v1648 = vadd.f32 %v1584, -0.16666667
        %v1649 = vadd.f32 %v1585, -0.16666667
        %v1650 = vadd.f32 %v1586, -0.16666667
        %v1651 = vadd.f32 %v1587, -0.16666667
        %v1652 = vadd.f32 %v1588, -0.16666667
        %v1653 = vadd.f32 %v1589, -0.16666667
        %v1654 = vadd.f32 %v1590, -0.16666667
        %v1655 = vadd.f32 %v1591, -0.16666667
        %v1656 = vadd.f32 %v1592, -0.16666667
        %v1657 = vadd.f32 %v1593, -0.16666667
        %v1658 = vadd.f32 %v1594, -0.16666667
        %v1659 = vadd.f32 %v1595, -0.16666667
        %v1660 = vadd.f32 %v1596, -0.16666667
        %v1661 = vadd.f32 %v1597, -0.16666667
        %v1662 = vadd.f32 %v1598, -0.16666667
        %v1663 = vadd.f32 %v1599, -0.16666667
        %v1664 = vadd.f32 %v1600, -0.16666667
        %v1665 = vadd.f32 %v1601, -0.16666667
        %v1666 = vadd.f32 %v1602, -0.16666667
        %v1667 = vadd.f32 %v1603, -0.16666667
        %v1668 = vmul.f32 %v900, %v964
        %v1669 = vmul.f32 %v901, %v965
        %v1670 = vmul.f32 %v902, %v966
        %v1671 = vmul.f32 %v903, %v967
        %v1672 = vmul.f32 %v904, %v968
        %v1673 = vmul.f32 %v905, %v969
        %v1674 = vmul.f32 %v906, %v970
        %v1675 = vmul.f32 %v907, %v971
        %v1676 = vmul.f32 %v908, %v972
        %v1677 = vmul.f32 %v909, %v973
        %v1678 = vmul.f32 %v910, %v974
        %v1679 = vmul.f32 %v911, %v975
        %v1680 = vmul.f32 %v912, %v976
        %v1681 = vmul.f32 %v913, %v977
        %v1682 = vmul.f32 %v914, %v978
        %v1683 = vmul.f32 %v915, %v979
        %v1684 = vmul.f32 %v916, %v980
        %v1685 = vmul.f32 %v917, %v981
        %v1686 = vmul.f32 %v918, %v982
        %v1687 = vmul.f32 %v919, %v983
        %v1688 = vmul.f32 %v920, %v984
        %v1689 = vmul.f32 %v921, %v985
        %v1690 = vmul.f32 %v922, %v986
        %v1691 = vmul.f32 %v923, %v987
        %v1692 = vmul.f32 %v924, %v988
        %v1693 = vmul.f32 %v925, %v989
        %v1694 = vmul.f32 %v926, %v990
        %v1695 = vmul.f32 %v927, %v991
        %v1696 = vmul.f32 %v928, %v992
        %v1697 = vmul.f32 %v929, %v993
        %v1698 = vmul.f32 %v930, %v994
        %v1699 = vmul.f32 %v931, %v995
        %v1700 = vmul.f32 %v932, %v996
        %v1701 = vmul.f32 %v933, %v997
        %v1702 = vmul.f32 %v934, %v998
        %v1703 = vmul.f32 %v935, %v999
        %v1704 = vmul.f32 %v936, %v1000
        %v1705 = vmul.f32 %v937, %v1001
        %v1706 = vmul.f32 %v938, %v1002
        %v1707 = vmul.f32 %v939, %v1003
        %v1708 = vmul.f32 %v940, %v1004
        %v1709 = vmul.f32 %v941, %v1005
        %v1710 = vmul.f32 %v942, %v1006
        %v1711 = vmul.f32 %v943, %v1007
        %v1712 = vmul.f32 %v944, %v1008
        %v1713 = vmul.f32 %v945, %v1009
        %v1714 = vmul.f32 %v946, %v1010
        %v1715 = vmul.f32 %v947, %v1011
        %v1716 = vmul.f32 %v948, %v1012
        %v1717 = vmul.f32 %v949, %v1013
        %v1718 = vmul.f32 %v950, %v1014
        %v1719 = vmul.f32 %v951, %v1015
        %v1720 = vmul.f32 %v952, %v1016
        %v1721 = vmul.f32 %v953, %v1017
        %v1722 = vmul.f32 %v954, %v1018
        %v1723 = vmul.f32 %v955, %v1019
        %v1724 = vmul.f32 %v956, %v1020
        %v1725 = vmul.f32 %v957, %v1021
        %v1726 = vmul.f32 %v958, %v1022
        %v1727 = vmul.f32 %v959, %v1023
        %v1728 = vmul.f32 %v960, %v1024
        %v1729 = vmul.f32 %v961, %v1025
        %v1730 = vmul.f32 %v962, %v1026
        %v1731 = vmul.f32 %v963, %v1027
        %v1732 = vmul.f32 %v1668, %v1604
        %v1733 = vmul.f32 %v1669, %v1605
        %v1734 = vmul.f32 %v1670, %v1606
        %v1735 = vmul.f32 %v1671, %v1607
        %v1736 = vmul.f32 %v1672, %v1608
        %v1737 = vmul.f32 %v1673, %v1609
        %v1738 = vmul.f32 %v1674, %v1610
        %v1739 = vmul.f32 %v1675, %v1611
        %v1740 = vmul.f32 %v1676, %v1612
        %v1741 = vmul.f32 %v1677, %v1613
        %v1742 = vmul.f32 %v1678, %v1614
        %v1743 = vmul.f32 %v1679, %v1615
        %v1744 = vmul.f32 %v1680, %v1616
        %v1745 = vmul.f32 %v1681, %v1617
        %v1746 = vmul.f32 %v1682, %v1618
        %v1747 = vmul.f32 %v1683, %v1619
        %v1748 = vmul.f32 %v1684, %v1620
        %v1749 = vmul.f32 %v1685, %v1621
        %v1750 = vmul.f32 %v1686, %v1622
        %v1751 = vmul.f32 %v1687, %v1623
        %v1752 = vmul.f32 %v1688, %v1624
        %v1753 = vmul.f32 %v1689, %v1625
        %v1754 = vmul.f32 %v1690, %v1626
        %v1755 = vmul.f32 %v1691, %v1627
        %v1756 = vmul.f32 %v1692, %v1628
        %v1757 = vmul.f32 %v1693, %v1629
        %v1758 = vmul.f32 %v1694, %v1630
        %v1759 = vmul.f32 %v1695, %v1631
        %v1760 = vmul.f32 %v1696, %v1632
        %v1761 = vmul.f32 %v1697, %v1633
        %v1762 = vmul.f32 %v1698, %v1634
        %v1763 = vmul.f32 %v1699, %v1635
        %v1764 = vmul.f32 %v1700, %v1636
        %v1765 = vmul.f32 %v1701, %v1637
        %v1766 = vmul.f32 %v1702, %v1638
        %v1767 = vmul.f32 %v1703, %v1639
        %v1768 = vmul.f32 %v1704, %v1640
        %v1769 = vmul.f32 %v1705, %v1641
        %v1770 = vmul.f32 %v1706, %v1642
        %v1771 = vmul.f32 %v1707, %v1643
        %v1772 = vmul.f32 %v1708, %v1644
        %v1773 = vmul.f32 %v1709, %v1645
        %v1774 = vmul.f32 %v1710, %v1646
        %v1775 = vmul.f32 %v1711, %v1647
        %v1776 = vmul.f32 %v1712, %v1648
        %v1777 = vmul.f32 %v1713, %v1649
        %v1778 = vmul.f32 %v1714, %v1650
        %v1779 = vmul.f32 %v1715, %v1651
        %v1780 = vmul.f32 %v1716, %v1652
        %v1781 = vmul.f32 %v1717, %v1653
        %v1782 = vmul.f32 %v1718, %v1654
        %v1783 = vmul.f32 %v1719, %v1655
        %v1784 = vmul.f32 %v1720, %v1656
        %v1785 = vmul.f32 %v1721, %v1657
        %v1786 = vmul.f32 %v1722, %v1658
        %v1787 = vmul.f32 %v1723, %v1659
        %v1788 = vmul.f32 %v1724, %v1660
        %v1789 = vmul.f32 %v1725, %v1661
        %v1790 = vmul.f32 %v1726, %v1662
        %v1791 = vmul.f32 %v1727, %v1663
        %v1792 = vmul.f32 %v1728, %v1664
        %v1793 = vmul.f32 %v1729, %v1665
        %v1794 = vmul.f32 %v1730, %v1666
        %v1795 = vmul.f32 %v1731, %v1667
        %v1796 = vadd.f32 %v900, %v1732
        %v1797 = vadd.f32 %v901, %v1733
        %v1798 = vadd.f32 %v902, %v1734
        %v1799 = vadd.f32 %v903, %v1735
        %v1800 = vadd.f32 %v904, %v1736
        %v1801 = vadd.f32 %v905, %v1737
        %v1802 = vadd.f32 %v906, %v1738
        %v1803 = vadd.f32 %v907, %v1739
        %v1804 = vadd.f32 %v908, %v1740
        %v1805 = vadd.f32 %v909, %v1741
        %v1806 = vadd.f32 %v910, %v1742
        %v1807 = vadd.f32 %v911, %v1743
        %v1808 = vadd.f32 %v912, %v1744
        %v1809 = vadd.f32 %v913, %v1745
        %v1810 = vadd.f32 %v914, %v1746
        %v1811 = vadd.f32 %v915, %v1747
        %v1812 = vadd.f32 %v916, %v1748
        %v1813 = vadd.f32 %v917, %v1749
        %v1814 = vadd.f32 %v918, %v1750
        %v1815 = vadd.f32 %v919, %v1751
        %v1816 = vadd.f32 %v920, %v1752
        %v1817 = vadd.f32 %v921, %v1753
        %v1818 = vadd.f32 %v922, %v1754
        %v1819 = vadd.f32 %v923, %v1755
        %v1820 = vadd.f32 %v924, %v1756
        %v1821 = vadd.f32 %v925, %v1757
        %v1822 = vadd.f32 %v926, %v1758
        %v1823 = vadd.f32 %v927, %v1759
        %v1824 = vadd.f32 %v928, %v1760
        %v1825 = vadd.f32 %v929, %v1761
        %v1826 = vadd.f32 %v930, %v1762
        %v1827 = vadd.f32 %v931, %v1763
        %v1828 = vadd.f32 %v932, %v1764
        %v1829 = vadd.f32 %v933, %v1765
        %v1830 = vadd.f32 %v934, %v1766
        %v1831 = vadd.f32 %v935, %v1767
        %v1832 = vadd.f32 %v936, %v1768
        %v1833 = vadd.f32 %v937, %v1769
        %v1834 = vadd.f32 %v938, %v1770
        %v1835 = vadd.f32 %v939, %v1771
        %v1836 = vadd.f32 %v940, %v1772
        %v1837 = vadd.f32 %v941, %v1773
        %v1838 = vadd.f32 %v942, %v1774
        %v1839 = vadd.f32 %v943, %v1775
        %v1840 = vadd.f32 %v944, %v1776
        %v1841 = vadd.f32 %v945, %v1777
        %v1842 = vadd.f32 %v946, %v1778
        %v1843 = vadd.f32 %v947, %v1779
        %v1844 = vadd.f32 %v948, %v1780
        %v1845 = vadd.f32 %v949, %v1781
        %v1846 = vadd.f32 %v950, %v1782
        %v1847 = vadd.f32 %v951, %v1783
        %v1848 = vadd.f32 %v952, %v1784
        %v1849 = vadd.f32 %v953, %v1785
        %v1850 = vadd.f32 %v954, %v1786
        %v1851 = vadd.f32 %v955, %v1787
        %v1852 = vadd.f32 %v956, %v1788
        %v1853 = vadd.f32 %v957, %v1789
        %v1854 = vadd.f32 %v958, %v1790
        %v1855 = vadd.f32 %v959, %v1791
        %v1856 = vadd.f32 %v960, %v1792
        %v1857 = vadd.f32 %v961, %v1793
        %v1858 = vadd.f32 %v962, %v1794
        %v1859 = vadd.f32 %v963, %v1795
        %v1860 = vpack.c.bf16 %v1798, %v1796
        %v1861 = vpack.c.bf16 %v1802, %v1800
        %v1862 = vpack.c.bf16 %v1806, %v1804
        %v1863 = vpack.c.bf16 %v1810, %v1808
        %v1864 = vpack.c.bf16 %v1814, %v1812
        %v1865 = vpack.c.bf16 %v1818, %v1816
        %v1866 = vpack.c.bf16 %v1822, %v1820
        %v1867 = vpack.c.bf16 %v1826, %v1824
        %v1868 = vpack.c.bf16 %v1830, %v1828
        %v1869 = vpack.c.bf16 %v1834, %v1832
        %v1870 = vpack.c.bf16 %v1838, %v1836
        %v1871 = vpack.c.bf16 %v1842, %v1840
        %v1872 = vpack.c.bf16 %v1846, %v1844
        %v1873 = vpack.c.bf16 %v1850, %v1848
        %v1874 = vpack.c.bf16 %v1854, %v1852
        %v1875 = vpack.c.bf16 %v1858, %v1856
        %v1876 = vld [vmem:[%s3] sm:$0xf]
        %v1877 = vld [vmem:[%s3 + $0x4] sm:$0xf]
        %v1878 = vld [vmem:[%s3 + $0x8] sm:$0xf]
        %v1879 = vld [vmem:[%s3 + $0xc] sm:$0xf]
        %v1880 = vld [vmem:[%s3 + $0x10] sm:$0xf]
        %v1881 = vld [vmem:[%s3 + $0x14] sm:$0xf]
        %v1882 = vld [vmem:[%s3 + $0x18] sm:$0xf]
        %v1883 = vld [vmem:[%s3 + $0x1c] sm:$0xf]
        %v1884 = vld [vmem:[%s3 + $0x20] sm:$0xf]
        %v1885 = vld [vmem:[%s3 + $0x24] sm:$0xf]
        %v1886 = vld [vmem:[%s3 + $0x28] sm:$0xf]
        %v1887 = vld [vmem:[%s3 + $0x2c] sm:$0xf]
        %v1888 = vld [vmem:[%s3 + $0x30] sm:$0xf]
        %v1889 = vld [vmem:[%s3 + $0x34] sm:$0xf]
        %v1890 = vld [vmem:[%s3 + $0x38] sm:$0xf]
        %v1891 = vld [vmem:[%s3 + $0x3c] sm:$0xf]
        %v1892 = vld [vmem:[%s4] sm:$0x1]
        %v1894 = vperm.slane %v1892, 0
        %v1912 = vunpack.c.l.b16 %v1876
        %v1913 = vunpack.c.l.b16 %v1877
        %v1914 = vunpack.c.l.b16 %v1878
        %v1915 = vunpack.c.l.b16 %v1879
        %v1916 = vunpack.c.l.b16 %v1880
        %v1917 = vunpack.c.l.b16 %v1881
        %v1918 = vunpack.c.l.b16 %v1882
        %v1919 = vunpack.c.l.b16 %v1883
        %v1920 = vunpack.c.l.b16 %v1884
        %v1921 = vunpack.c.l.b16 %v1885
        %v1922 = vunpack.c.l.b16 %v1886
        %v1923 = vunpack.c.l.b16 %v1887
        %v1924 = vunpack.c.l.b16 %v1888
        %v1925 = vunpack.c.l.b16 %v1889
        %v1926 = vunpack.c.l.b16 %v1890
        %v1927 = vunpack.c.l.b16 %v1891
        %v1928 = vpack.c.b16 %v1913, %v1912
        %v1929 = vpack.c.b16 %v1915, %v1914
        %v1930 = vpack.c.b16 %v1917, %v1916
        %v1931 = vpack.c.b16 %v1919, %v1918
        %v1932 = vpack.c.b16 %v1921, %v1920
        %v1933 = vpack.c.b16 %v1923, %v1922
        %v1934 = vpack.c.b16 %v1925, %v1924
        %v1935 = vpack.c.b16 %v1927, %v1926
        %1944 = vmatpush.bf16.msra.mxu0 %v1935
        %1945 = vmatpush.bf16.msra.mxu0 %v1934
        %1946 = vmatpush.bf16.msra.mxu0 %v1933
        %1947 = vmatpush.bf16.msra.mxu0 %v1932
        %1948 = vmatpush.bf16.msra.mxu0 %v1931
        %1949 = vmatpush.bf16.msra.mxu0 %v1930
        %1950 = vmatpush.bf16.msra.mxu0 %v1929
        %1951 = vmatpush.bf16.msra.mxu0 %v1928
        %1952 = vmatmul.bf16.gmra.mxu0 %v1860
        %v1953 = vpop.f32.mrf.mxu0
        %v1954 = vadd.f32 %v1894, %v1953
        %v1955 = vpop.f32.mrf.mxu0
        %v1956 = vadd.f32 %v1894, %v1955
        %1957 = vmatmul.bf16.gmra.mxu0 %v1861
        %v1958 = vpop.f32.mrf.mxu0
        %v1959 = vadd.f32 %v1894, %v1958
        %v1960 = vpop.f32.mrf.mxu0
        %v1961 = vadd.f32 %v1894, %v1960
        %1962 = vmatmul.bf16.gmra.mxu0 %v1862
        %v1963 = vpop.f32.mrf.mxu0
        %v1964 = vadd.f32 %v1894, %v1963
        %v1965 = vpop.f32.mrf.mxu0
        %v1966 = vadd.f32 %v1894, %v1965
        %1967 = vmatmul.bf16.gmra.mxu0 %v1863
        %v1968 = vpop.f32.mrf.mxu0
        %v1969 = vadd.f32 %v1894, %v1968
        %v1970 = vpop.f32.mrf.mxu0
        %v1971 = vadd.f32 %v1894, %v1970
        %1972 = vmatmul.bf16.gmra.mxu0 %v1864
        %v1973 = vpop.f32.mrf.mxu0
        %v1974 = vadd.f32 %v1894, %v1973
        %v1975 = vpop.f32.mrf.mxu0
        %v1976 = vadd.f32 %v1894, %v1975
        %1977 = vmatmul.bf16.gmra.mxu0 %v1865
        %v1978 = vpop.f32.mrf.mxu0
        %v1979 = vadd.f32 %v1894, %v1978
        %v1980 = vpop.f32.mrf.mxu0
        %v1981 = vadd.f32 %v1894, %v1980
        %1982 = vmatmul.bf16.gmra.mxu0 %v1866
        %v1983 = vpop.f32.mrf.mxu0
        %v1984 = vadd.f32 %v1894, %v1983
        %v1985 = vpop.f32.mrf.mxu0
        %v1986 = vadd.f32 %v1894, %v1985
        %1987 = vmatmul.bf16.gmra.mxu0 %v1867
        %v1988 = vpop.f32.mrf.mxu0
        %v1989 = vadd.f32 %v1894, %v1988
        %v1990 = vpop.f32.mrf.mxu0
        %v1991 = vadd.f32 %v1894, %v1990
        %1992 = vmatmul.bf16.gmra.mxu0 %v1868
        %v1993 = vpop.f32.mrf.mxu0
        %v1994 = vadd.f32 %v1894, %v1993
        %v1995 = vpop.f32.mrf.mxu0
        %v1996 = vadd.f32 %v1894, %v1995
        %1997 = vmatmul.bf16.gmra.mxu0 %v1869
        %v1998 = vpop.f32.mrf.mxu0
        %v1999 = vadd.f32 %v1894, %v1998
        %v2000 = vpop.f32.mrf.mxu0
        %v2001 = vadd.f32 %v1894, %v2000
        %2002 = vmatmul.bf16.gmra.mxu0 %v1870
        %v2003 = vpop.f32.mrf.mxu0
        %v2004 = vadd.f32 %v1894, %v2003
        %v2005 = vpop.f32.mrf.mxu0
        %v2006 = vadd.f32 %v1894, %v2005
        %2007 = vmatmul.bf16.gmra.mxu0 %v1871
        %v2008 = vpop.f32.mrf.mxu0
        %v2009 = vadd.f32 %v1894, %v2008
        %v2010 = vpop.f32.mrf.mxu0
        %v2011 = vadd.f32 %v1894, %v2010
        %2012 = vmatmul.bf16.gmra.mxu0 %v1872
        %v2013 = vpop.f32.mrf.mxu0
        %v2014 = vadd.f32 %v1894, %v2013
        %v2015 = vpop.f32.mrf.mxu0
        %v2016 = vadd.f32 %v1894, %v2015
        %2017 = vmatmul.bf16.gmra.mxu0 %v1873
        %v2018 = vpop.f32.mrf.mxu0
        %v2019 = vadd.f32 %v1894, %v2018
        %v2020 = vpop.f32.mrf.mxu0
        %v2021 = vadd.f32 %v1894, %v2020
        %2022 = vmatmul.bf16.gmra.mxu0 %v1874
        %v2023 = vpop.f32.mrf.mxu0
        %v2024 = vadd.f32 %v1894, %v2023
        %v2025 = vpop.f32.mrf.mxu0
        %v2026 = vadd.f32 %v1894, %v2025
        %2027 = vmatmul.bf16.gmra.mxu0 %v1875
        %v2028 = vpop.f32.mrf.mxu0
        %v2029 = vadd.f32 %v1894, %v2028
        %v2030 = vpop.f32.mrf.mxu0
        %v2031 = vadd.f32 %v1894, %v2030
        %2032 = vdwg.mxu0
        %v2033 = vmul.f32 %v1954, 0.15915494
        %v2034 = vmul.f32 %v1956, 0.15915494
        %v2035 = vmul.f32 %v1959, 0.15915494
        %v2036 = vmul.f32 %v1961, 0.15915494
        %v2037 = vmul.f32 %v1964, 0.15915494
        %v2038 = vmul.f32 %v1966, 0.15915494
        %v2039 = vmul.f32 %v1969, 0.15915494
        %v2040 = vmul.f32 %v1971, 0.15915494
        %v2041 = vmul.f32 %v1974, 0.15915494
        %v2042 = vmul.f32 %v1976, 0.15915494
        %v2043 = vmul.f32 %v1979, 0.15915494
        %v2044 = vmul.f32 %v1981, 0.15915494
        %v2045 = vmul.f32 %v1984, 0.15915494
        %v2046 = vmul.f32 %v1986, 0.15915494
        %v2047 = vmul.f32 %v1989, 0.15915494
        %v2048 = vmul.f32 %v1991, 0.15915494
        %v2049 = vmul.f32 %v1994, 0.15915494
        %v2050 = vmul.f32 %v1996, 0.15915494
        %v2051 = vmul.f32 %v1999, 0.15915494
        %v2052 = vmul.f32 %v2001, 0.15915494
        %v2053 = vmul.f32 %v2004, 0.15915494
        %v2054 = vmul.f32 %v2006, 0.15915494
        %v2055 = vmul.f32 %v2009, 0.15915494
        %v2056 = vmul.f32 %v2011, 0.15915494
        %v2057 = vmul.f32 %v2014, 0.15915494
        %v2058 = vmul.f32 %v2016, 0.15915494
        %v2059 = vmul.f32 %v2019, 0.15915494
        %v2060 = vmul.f32 %v2021, 0.15915494
        %v2061 = vmul.f32 %v2024, 0.15915494
        %v2062 = vmul.f32 %v2026, 0.15915494
        %v2063 = vmul.f32 %v2029, 0.15915494
        %v2064 = vmul.f32 %v2031, 0.15915494
        %v2065 = vround.ne.pseudo %v2033
        %v2066 = vround.ne.pseudo %v2034
        %v2067 = vround.ne.pseudo %v2035
        %v2068 = vround.ne.pseudo %v2036
        %v2069 = vround.ne.pseudo %v2037
        %v2070 = vround.ne.pseudo %v2038
        %v2071 = vround.ne.pseudo %v2039
        %v2072 = vround.ne.pseudo %v2040
        %v2073 = vround.ne.pseudo %v2041
        %v2074 = vround.ne.pseudo %v2042
        %v2075 = vround.ne.pseudo %v2043
        %v2076 = vround.ne.pseudo %v2044
        %v2077 = vround.ne.pseudo %v2045
        %v2078 = vround.ne.pseudo %v2046
        %v2079 = vround.ne.pseudo %v2047
        %v2080 = vround.ne.pseudo %v2048
        %v2081 = vround.ne.pseudo %v2049
        %v2082 = vround.ne.pseudo %v2050
        %v2083 = vround.ne.pseudo %v2051
        %v2084 = vround.ne.pseudo %v2052
        %v2085 = vround.ne.pseudo %v2053
        %v2086 = vround.ne.pseudo %v2054
        %v2087 = vround.ne.pseudo %v2055
        %v2088 = vround.ne.pseudo %v2056
        %v2089 = vround.ne.pseudo %v2057
        %v2090 = vround.ne.pseudo %v2058
        %v2091 = vround.ne.pseudo %v2059
        %v2092 = vround.ne.pseudo %v2060
        %v2093 = vround.ne.pseudo %v2061
        %v2094 = vround.ne.pseudo %v2062
        %v2095 = vround.ne.pseudo %v2063
        %v2096 = vround.ne.pseudo %v2064
        %v2097 = vmul.f32 %v2065, 6.28125
        %v2098 = vmul.f32 %v2066, 6.28125
        %v2099 = vmul.f32 %v2067, 6.28125
        %v2100 = vmul.f32 %v2068, 6.28125
        %v2101 = vmul.f32 %v2069, 6.28125
        %v2102 = vmul.f32 %v2070, 6.28125
        %v2103 = vmul.f32 %v2071, 6.28125
        %v2104 = vmul.f32 %v2072, 6.28125
        %v2105 = vmul.f32 %v2073, 6.28125
        %v2106 = vmul.f32 %v2074, 6.28125
        %v2107 = vmul.f32 %v2075, 6.28125
        %v2108 = vmul.f32 %v2076, 6.28125
        %v2109 = vmul.f32 %v2077, 6.28125
        %v2110 = vmul.f32 %v2078, 6.28125
        %v2111 = vmul.f32 %v2079, 6.28125
        %v2112 = vmul.f32 %v2080, 6.28125
        %v2113 = vmul.f32 %v2081, 6.28125
        %v2114 = vmul.f32 %v2082, 6.28125
        %v2115 = vmul.f32 %v2083, 6.28125
        %v2116 = vmul.f32 %v2084, 6.28125
        %v2117 = vmul.f32 %v2085, 6.28125
        %v2118 = vmul.f32 %v2086, 6.28125
        %v2119 = vmul.f32 %v2087, 6.28125
        %v2120 = vmul.f32 %v2088, 6.28125
        %v2121 = vmul.f32 %v2089, 6.28125
        %v2122 = vmul.f32 %v2090, 6.28125
        %v2123 = vmul.f32 %v2091, 6.28125
        %v2124 = vmul.f32 %v2092, 6.28125
        %v2125 = vmul.f32 %v2093, 6.28125
        %v2126 = vmul.f32 %v2094, 6.28125
        %v2127 = vmul.f32 %v2095, 6.28125
        %v2128 = vmul.f32 %v2096, 6.28125
        %v2129 = vsub.f32 %v1954, %v2097
        %v2130 = vsub.f32 %v1956, %v2098
        %v2131 = vsub.f32 %v1959, %v2099
        %v2132 = vsub.f32 %v1961, %v2100
        %v2133 = vsub.f32 %v1964, %v2101
        %v2134 = vsub.f32 %v1966, %v2102
        %v2135 = vsub.f32 %v1969, %v2103
        %v2136 = vsub.f32 %v1971, %v2104
        %v2137 = vsub.f32 %v1974, %v2105
        %v2138 = vsub.f32 %v1976, %v2106
        %v2139 = vsub.f32 %v1979, %v2107
        %v2140 = vsub.f32 %v1981, %v2108
        %v2141 = vsub.f32 %v1984, %v2109
        %v2142 = vsub.f32 %v1986, %v2110
        %v2143 = vsub.f32 %v1989, %v2111
        %v2144 = vsub.f32 %v1991, %v2112
        %v2145 = vsub.f32 %v1994, %v2113
        %v2146 = vsub.f32 %v1996, %v2114
        %v2147 = vsub.f32 %v1999, %v2115
        %v2148 = vsub.f32 %v2001, %v2116
        %v2149 = vsub.f32 %v2004, %v2117
        %v2150 = vsub.f32 %v2006, %v2118
        %v2151 = vsub.f32 %v2009, %v2119
        %v2152 = vsub.f32 %v2011, %v2120
        %v2153 = vsub.f32 %v2014, %v2121
        %v2154 = vsub.f32 %v2016, %v2122
        %v2155 = vsub.f32 %v2019, %v2123
        %v2156 = vsub.f32 %v2021, %v2124
        %v2157 = vsub.f32 %v2024, %v2125
        %v2158 = vsub.f32 %v2026, %v2126
        %v2159 = vsub.f32 %v2029, %v2127
        %v2160 = vsub.f32 %v2031, %v2128
        %v2161 = vmul.f32 %v2065, 0.0019353072
        %v2162 = vmul.f32 %v2066, 0.0019353072
        %v2163 = vmul.f32 %v2067, 0.0019353072
        %v2164 = vmul.f32 %v2068, 0.0019353072
        %v2165 = vmul.f32 %v2069, 0.0019353072
        %v2166 = vmul.f32 %v2070, 0.0019353072
        %v2167 = vmul.f32 %v2071, 0.0019353072
        %v2168 = vmul.f32 %v2072, 0.0019353072
        %v2169 = vmul.f32 %v2073, 0.0019353072
        %v2170 = vmul.f32 %v2074, 0.0019353072
        %v2171 = vmul.f32 %v2075, 0.0019353072
        %v2172 = vmul.f32 %v2076, 0.0019353072
        %v2173 = vmul.f32 %v2077, 0.0019353072
        %v2174 = vmul.f32 %v2078, 0.0019353072
        %v2175 = vmul.f32 %v2079, 0.0019353072
        %v2176 = vmul.f32 %v2080, 0.0019353072
        %v2177 = vmul.f32 %v2081, 0.0019353072
        %v2178 = vmul.f32 %v2082, 0.0019353072
        %v2179 = vmul.f32 %v2083, 0.0019353072
        %v2180 = vmul.f32 %v2084, 0.0019353072
        %v2181 = vmul.f32 %v2085, 0.0019353072
        %v2182 = vmul.f32 %v2086, 0.0019353072
        %v2183 = vmul.f32 %v2087, 0.0019353072
        %v2184 = vmul.f32 %v2088, 0.0019353072
        %v2185 = vmul.f32 %v2089, 0.0019353072
        %v2186 = vmul.f32 %v2090, 0.0019353072
        %v2187 = vmul.f32 %v2091, 0.0019353072
        %v2188 = vmul.f32 %v2092, 0.0019353072
        %v2189 = vmul.f32 %v2093, 0.0019353072
        %v2190 = vmul.f32 %v2094, 0.0019353072
        %v2191 = vmul.f32 %v2095, 0.0019353072
        %v2192 = vmul.f32 %v2096, 0.0019353072
        %v2193 = vsub.f32 %v2129, %v2161
        %v2194 = vsub.f32 %v2130, %v2162
        %v2195 = vsub.f32 %v2131, %v2163
        %v2196 = vsub.f32 %v2132, %v2164
        %v2197 = vsub.f32 %v2133, %v2165
        %v2198 = vsub.f32 %v2134, %v2166
        %v2199 = vsub.f32 %v2135, %v2167
        %v2200 = vsub.f32 %v2136, %v2168
        %v2201 = vsub.f32 %v2137, %v2169
        %v2202 = vsub.f32 %v2138, %v2170
        %v2203 = vsub.f32 %v2139, %v2171
        %v2204 = vsub.f32 %v2140, %v2172
        %v2205 = vsub.f32 %v2141, %v2173
        %v2206 = vsub.f32 %v2142, %v2174
        %v2207 = vsub.f32 %v2143, %v2175
        %v2208 = vsub.f32 %v2144, %v2176
        %v2209 = vsub.f32 %v2145, %v2177
        %v2210 = vsub.f32 %v2146, %v2178
        %v2211 = vsub.f32 %v2147, %v2179
        %v2212 = vsub.f32 %v2148, %v2180
        %v2213 = vsub.f32 %v2149, %v2181
        %v2214 = vsub.f32 %v2150, %v2182
        %v2215 = vsub.f32 %v2151, %v2183
        %v2216 = vsub.f32 %v2152, %v2184
        %v2217 = vsub.f32 %v2153, %v2185
        %v2218 = vsub.f32 %v2154, %v2186
        %v2219 = vsub.f32 %v2155, %v2187
        %v2220 = vsub.f32 %v2156, %v2188
        %v2221 = vsub.f32 %v2157, %v2189
        %v2222 = vsub.f32 %v2158, %v2190
        %v2223 = vsub.f32 %v2159, %v2191
        %v2224 = vsub.f32 %v2160, %v2192
        %v2225 = vmul.f32 %v2193, %v2193
        %v2226 = vmul.f32 %v2194, %v2194
        %v2227 = vmul.f32 %v2195, %v2195
        %v2228 = vmul.f32 %v2196, %v2196
        %v2229 = vmul.f32 %v2197, %v2197
        %v2230 = vmul.f32 %v2198, %v2198
        %v2231 = vmul.f32 %v2199, %v2199
        %v2232 = vmul.f32 %v2200, %v2200
        %v2233 = vmul.f32 %v2201, %v2201
        %v2234 = vmul.f32 %v2202, %v2202
        %v2235 = vmul.f32 %v2203, %v2203
        %v2236 = vmul.f32 %v2204, %v2204
        %v2237 = vmul.f32 %v2205, %v2205
        %v2238 = vmul.f32 %v2206, %v2206
        %v2239 = vmul.f32 %v2207, %v2207
        %v2240 = vmul.f32 %v2208, %v2208
        %v2241 = vmul.f32 %v2209, %v2209
        %v2242 = vmul.f32 %v2210, %v2210
        %v2243 = vmul.f32 %v2211, %v2211
        %v2244 = vmul.f32 %v2212, %v2212
        %v2245 = vmul.f32 %v2213, %v2213
        %v2246 = vmul.f32 %v2214, %v2214
        %v2247 = vmul.f32 %v2215, %v2215
        %v2248 = vmul.f32 %v2216, %v2216
        %v2249 = vmul.f32 %v2217, %v2217
        %v2250 = vmul.f32 %v2218, %v2218
        %v2251 = vmul.f32 %v2219, %v2219
        %v2252 = vmul.f32 %v2220, %v2220
        %v2253 = vmul.f32 %v2221, %v2221
        %v2254 = vmul.f32 %v2222, %v2222
        %v2255 = vmul.f32 %v2223, %v2223
        %v2256 = vmul.f32 %v2224, %v2224
        %v2257 = vmul.f32 %v2225, 1.6059044e-10
        %v2258 = vmul.f32 %v2226, 1.6059044e-10
        %v2259 = vmul.f32 %v2227, 1.6059044e-10
        %v2260 = vmul.f32 %v2228, 1.6059044e-10
        %v2261 = vmul.f32 %v2229, 1.6059044e-10
        %v2262 = vmul.f32 %v2230, 1.6059044e-10
        %v2263 = vmul.f32 %v2231, 1.6059044e-10
        %v2264 = vmul.f32 %v2232, 1.6059044e-10
        %v2265 = vmul.f32 %v2233, 1.6059044e-10
        %v2266 = vmul.f32 %v2234, 1.6059044e-10
        %v2267 = vmul.f32 %v2235, 1.6059044e-10
        %v2268 = vmul.f32 %v2236, 1.6059044e-10
        %v2269 = vmul.f32 %v2237, 1.6059044e-10
        %v2270 = vmul.f32 %v2238, 1.6059044e-10
        %v2271 = vmul.f32 %v2239, 1.6059044e-10
        %v2272 = vmul.f32 %v2240, 1.6059044e-10
        %v2273 = vmul.f32 %v2241, 1.6059044e-10
        %v2274 = vmul.f32 %v2242, 1.6059044e-10
        %v2275 = vmul.f32 %v2243, 1.6059044e-10
        %v2276 = vmul.f32 %v2244, 1.6059044e-10
        %v2277 = vmul.f32 %v2245, 1.6059044e-10
        %v2278 = vmul.f32 %v2246, 1.6059044e-10
        %v2279 = vmul.f32 %v2247, 1.6059044e-10
        %v2280 = vmul.f32 %v2248, 1.6059044e-10
        %v2281 = vmul.f32 %v2249, 1.6059044e-10
        %v2282 = vmul.f32 %v2250, 1.6059044e-10
        %v2283 = vmul.f32 %v2251, 1.6059044e-10
        %v2284 = vmul.f32 %v2252, 1.6059044e-10
        %v2285 = vmul.f32 %v2253, 1.6059044e-10
        %v2286 = vmul.f32 %v2254, 1.6059044e-10
        %v2287 = vmul.f32 %v2255, 1.6059044e-10
        %v2288 = vmul.f32 %v2256, 1.6059044e-10
        %v2289 = vadd.f32 %v2257, -2.5052108e-08
        %v2290 = vadd.f32 %v2258, -2.5052108e-08
        %v2291 = vadd.f32 %v2259, -2.5052108e-08
        %v2292 = vadd.f32 %v2260, -2.5052108e-08
        %v2293 = vadd.f32 %v2261, -2.5052108e-08
        %v2294 = vadd.f32 %v2262, -2.5052108e-08
        %v2295 = vadd.f32 %v2263, -2.5052108e-08
        %v2296 = vadd.f32 %v2264, -2.5052108e-08
        %v2297 = vadd.f32 %v2265, -2.5052108e-08
        %v2298 = vadd.f32 %v2266, -2.5052108e-08
        %v2299 = vadd.f32 %v2267, -2.5052108e-08
        %v2300 = vadd.f32 %v2268, -2.5052108e-08
        %v2301 = vadd.f32 %v2269, -2.5052108e-08
        %v2302 = vadd.f32 %v2270, -2.5052108e-08
        %v2303 = vadd.f32 %v2271, -2.5052108e-08
        %v2304 = vadd.f32 %v2272, -2.5052108e-08
        %v2305 = vadd.f32 %v2273, -2.5052108e-08
        %v2306 = vadd.f32 %v2274, -2.5052108e-08
        %v2307 = vadd.f32 %v2275, -2.5052108e-08
        %v2308 = vadd.f32 %v2276, -2.5052108e-08
        %v2309 = vadd.f32 %v2277, -2.5052108e-08
        %v2310 = vadd.f32 %v2278, -2.5052108e-08
        %v2311 = vadd.f32 %v2279, -2.5052108e-08
        %v2312 = vadd.f32 %v2280, -2.5052108e-08
        %v2313 = vadd.f32 %v2281, -2.5052108e-08
        %v2314 = vadd.f32 %v2282, -2.5052108e-08
        %v2315 = vadd.f32 %v2283, -2.5052108e-08
        %v2316 = vadd.f32 %v2284, -2.5052108e-08
        %v2317 = vadd.f32 %v2285, -2.5052108e-08
        %v2318 = vadd.f32 %v2286, -2.5052108e-08
        %v2319 = vadd.f32 %v2287, -2.5052108e-08
        %v2320 = vadd.f32 %v2288, -2.5052108e-08
        %v2321 = vmul.f32 %v2289, %v2225
        %v2322 = vmul.f32 %v2290, %v2226
        %v2323 = vmul.f32 %v2291, %v2227
        %v2324 = vmul.f32 %v2292, %v2228
        %v2325 = vmul.f32 %v2293, %v2229
        %v2326 = vmul.f32 %v2294, %v2230
        %v2327 = vmul.f32 %v2295, %v2231
        %v2328 = vmul.f32 %v2296, %v2232
        %v2329 = vmul.f32 %v2297, %v2233
        %v2330 = vmul.f32 %v2298, %v2234
        %v2331 = vmul.f32 %v2299, %v2235
        %v2332 = vmul.f32 %v2300, %v2236
        %v2333 = vmul.f32 %v2301, %v2237
        %v2334 = vmul.f32 %v2302, %v2238
        %v2335 = vmul.f32 %v2303, %v2239
        %v2336 = vmul.f32 %v2304, %v2240
        %v2337 = vmul.f32 %v2305, %v2241
        %v2338 = vmul.f32 %v2306, %v2242
        %v2339 = vmul.f32 %v2307, %v2243
        %v2340 = vmul.f32 %v2308, %v2244
        %v2341 = vmul.f32 %v2309, %v2245
        %v2342 = vmul.f32 %v2310, %v2246
        %v2343 = vmul.f32 %v2311, %v2247
        %v2344 = vmul.f32 %v2312, %v2248
        %v2345 = vmul.f32 %v2313, %v2249
        %v2346 = vmul.f32 %v2314, %v2250
        %v2347 = vmul.f32 %v2315, %v2251
        %v2348 = vmul.f32 %v2316, %v2252
        %v2349 = vmul.f32 %v2317, %v2253
        %v2350 = vmul.f32 %v2318, %v2254
        %v2351 = vmul.f32 %v2319, %v2255
        %v2352 = vmul.f32 %v2320, %v2256
        %v2353 = vadd.f32 %v2321, 2.7557319e-06
        %v2354 = vadd.f32 %v2322, 2.7557319e-06
        %v2355 = vadd.f32 %v2323, 2.7557319e-06
        %v2356 = vadd.f32 %v2324, 2.7557319e-06
        %v2357 = vadd.f32 %v2325, 2.7557319e-06
        %v2358 = vadd.f32 %v2326, 2.7557319e-06
        %v2359 = vadd.f32 %v2327, 2.7557319e-06
        %v2360 = vadd.f32 %v2328, 2.7557319e-06
        %v2361 = vadd.f32 %v2329, 2.7557319e-06
        %v2362 = vadd.f32 %v2330, 2.7557319e-06
        %v2363 = vadd.f32 %v2331, 2.7557319e-06
        %v2364 = vadd.f32 %v2332, 2.7557319e-06
        %v2365 = vadd.f32 %v2333, 2.7557319e-06
        %v2366 = vadd.f32 %v2334, 2.7557319e-06
        %v2367 = vadd.f32 %v2335, 2.7557319e-06
        %v2368 = vadd.f32 %v2336, 2.7557319e-06
        %v2369 = vadd.f32 %v2337, 2.7557319e-06
        %v2370 = vadd.f32 %v2338, 2.7557319e-06
        %v2371 = vadd.f32 %v2339, 2.7557319e-06
        %v2372 = vadd.f32 %v2340, 2.7557319e-06
        %v2373 = vadd.f32 %v2341, 2.7557319e-06
        %v2374 = vadd.f32 %v2342, 2.7557319e-06
        %v2375 = vadd.f32 %v2343, 2.7557319e-06
        %v2376 = vadd.f32 %v2344, 2.7557319e-06
        %v2377 = vadd.f32 %v2345, 2.7557319e-06
        %v2378 = vadd.f32 %v2346, 2.7557319e-06
        %v2379 = vadd.f32 %v2347, 2.7557319e-06
        %v2380 = vadd.f32 %v2348, 2.7557319e-06
        %v2381 = vadd.f32 %v2349, 2.7557319e-06
        %v2382 = vadd.f32 %v2350, 2.7557319e-06
        %v2383 = vadd.f32 %v2351, 2.7557319e-06
        %v2384 = vadd.f32 %v2352, 2.7557319e-06
        %v2385 = vmul.f32 %v2353, %v2225
        %v2386 = vmul.f32 %v2354, %v2226
        %v2387 = vmul.f32 %v2355, %v2227
        %v2388 = vmul.f32 %v2356, %v2228
        %v2389 = vmul.f32 %v2357, %v2229
        %v2390 = vmul.f32 %v2358, %v2230
        %v2391 = vmul.f32 %v2359, %v2231
        %v2392 = vmul.f32 %v2360, %v2232
        %v2393 = vmul.f32 %v2361, %v2233
        %v2394 = vmul.f32 %v2362, %v2234
        %v2395 = vmul.f32 %v2363, %v2235
        %v2396 = vmul.f32 %v2364, %v2236
        %v2397 = vmul.f32 %v2365, %v2237
        %v2398 = vmul.f32 %v2366, %v2238
        %v2399 = vmul.f32 %v2367, %v2239
        %v2400 = vmul.f32 %v2368, %v2240
        %v2401 = vmul.f32 %v2369, %v2241
        %v2402 = vmul.f32 %v2370, %v2242
        %v2403 = vmul.f32 %v2371, %v2243
        %v2404 = vmul.f32 %v2372, %v2244
        %v2405 = vmul.f32 %v2373, %v2245
        %v2406 = vmul.f32 %v2374, %v2246
        %v2407 = vmul.f32 %v2375, %v2247
        %v2408 = vmul.f32 %v2376, %v2248
        %v2409 = vmul.f32 %v2377, %v2249
        %v2410 = vmul.f32 %v2378, %v2250
        %v2411 = vmul.f32 %v2379, %v2251
        %v2412 = vmul.f32 %v2380, %v2252
        %v2413 = vmul.f32 %v2381, %v2253
        %v2414 = vmul.f32 %v2382, %v2254
        %v2415 = vmul.f32 %v2383, %v2255
        %v2416 = vmul.f32 %v2384, %v2256
        %v2417 = vadd.f32 %v2385, -0.0001984127
        %v2418 = vadd.f32 %v2386, -0.0001984127
        %v2419 = vadd.f32 %v2387, -0.0001984127
        %v2420 = vadd.f32 %v2388, -0.0001984127
        %v2421 = vadd.f32 %v2389, -0.0001984127
        %v2422 = vadd.f32 %v2390, -0.0001984127
        %v2423 = vadd.f32 %v2391, -0.0001984127
        %v2424 = vadd.f32 %v2392, -0.0001984127
        %v2425 = vadd.f32 %v2393, -0.0001984127
        %v2426 = vadd.f32 %v2394, -0.0001984127
        %v2427 = vadd.f32 %v2395, -0.0001984127
        %v2428 = vadd.f32 %v2396, -0.0001984127
        %v2429 = vadd.f32 %v2397, -0.0001984127
        %v2430 = vadd.f32 %v2398, -0.0001984127
        %v2431 = vadd.f32 %v2399, -0.0001984127
        %v2432 = vadd.f32 %v2400, -0.0001984127
        %v2433 = vadd.f32 %v2401, -0.0001984127
        %v2434 = vadd.f32 %v2402, -0.0001984127
        %v2435 = vadd.f32 %v2403, -0.0001984127
        %v2436 = vadd.f32 %v2404, -0.0001984127
        %v2437 = vadd.f32 %v2405, -0.0001984127
        %v2438 = vadd.f32 %v2406, -0.0001984127
        %v2439 = vadd.f32 %v2407, -0.0001984127
        %v2440 = vadd.f32 %v2408, -0.0001984127
        %v2441 = vadd.f32 %v2409, -0.0001984127
        %v2442 = vadd.f32 %v2410, -0.0001984127
        %v2443 = vadd.f32 %v2411, -0.0001984127
        %v2444 = vadd.f32 %v2412, -0.0001984127
        %v2445 = vadd.f32 %v2413, -0.0001984127
        %v2446 = vadd.f32 %v2414, -0.0001984127
        %v2447 = vadd.f32 %v2415, -0.0001984127
        %v2448 = vadd.f32 %v2416, -0.0001984127
        %v2449 = vmul.f32 %v2417, %v2225
        %v2450 = vmul.f32 %v2418, %v2226
        %v2451 = vmul.f32 %v2419, %v2227
        %v2452 = vmul.f32 %v2420, %v2228
        %v2453 = vmul.f32 %v2421, %v2229
        %v2454 = vmul.f32 %v2422, %v2230
        %v2455 = vmul.f32 %v2423, %v2231
        %v2456 = vmul.f32 %v2424, %v2232
        %v2457 = vmul.f32 %v2425, %v2233
        %v2458 = vmul.f32 %v2426, %v2234
        %v2459 = vmul.f32 %v2427, %v2235
        %v2460 = vmul.f32 %v2428, %v2236
        %v2461 = vmul.f32 %v2429, %v2237
        %v2462 = vmul.f32 %v2430, %v2238
        %v2463 = vmul.f32 %v2431, %v2239
        %v2464 = vmul.f32 %v2432, %v2240
        %v2465 = vmul.f32 %v2433, %v2241
        %v2466 = vmul.f32 %v2434, %v2242
        %v2467 = vmul.f32 %v2435, %v2243
        %v2468 = vmul.f32 %v2436, %v2244
        %v2469 = vmul.f32 %v2437, %v2245
        %v2470 = vmul.f32 %v2438, %v2246
        %v2471 = vmul.f32 %v2439, %v2247
        %v2472 = vmul.f32 %v2440, %v2248
        %v2473 = vmul.f32 %v2441, %v2249
        %v2474 = vmul.f32 %v2442, %v2250
        %v2475 = vmul.f32 %v2443, %v2251
        %v2476 = vmul.f32 %v2444, %v2252
        %v2477 = vmul.f32 %v2445, %v2253
        %v2478 = vmul.f32 %v2446, %v2254
        %v2479 = vmul.f32 %v2447, %v2255
        %v2480 = vmul.f32 %v2448, %v2256
        %v2481 = vadd.f32 %v2449, 0.008333334
        %v2482 = vadd.f32 %v2450, 0.008333334
        %v2483 = vadd.f32 %v2451, 0.008333334
        %v2484 = vadd.f32 %v2452, 0.008333334
        %v2485 = vadd.f32 %v2453, 0.008333334
        %v2486 = vadd.f32 %v2454, 0.008333334
        %v2487 = vadd.f32 %v2455, 0.008333334
        %v2488 = vadd.f32 %v2456, 0.008333334
        %v2489 = vadd.f32 %v2457, 0.008333334
        %v2490 = vadd.f32 %v2458, 0.008333334
        %v2491 = vadd.f32 %v2459, 0.008333334
        %v2492 = vadd.f32 %v2460, 0.008333334
        %v2493 = vadd.f32 %v2461, 0.008333334
        %v2494 = vadd.f32 %v2462, 0.008333334
        %v2495 = vadd.f32 %v2463, 0.008333334
        %v2496 = vadd.f32 %v2464, 0.008333334
        %v2497 = vadd.f32 %v2465, 0.008333334
        %v2498 = vadd.f32 %v2466, 0.008333334
        %v2499 = vadd.f32 %v2467, 0.008333334
        %v2500 = vadd.f32 %v2468, 0.008333334
        %v2501 = vadd.f32 %v2469, 0.008333334
        %v2502 = vadd.f32 %v2470, 0.008333334
        %v2503 = vadd.f32 %v2471, 0.008333334
        %v2504 = vadd.f32 %v2472, 0.008333334
        %v2505 = vadd.f32 %v2473, 0.008333334
        %v2506 = vadd.f32 %v2474, 0.008333334
        %v2507 = vadd.f32 %v2475, 0.008333334
        %v2508 = vadd.f32 %v2476, 0.008333334
        %v2509 = vadd.f32 %v2477, 0.008333334
        %v2510 = vadd.f32 %v2478, 0.008333334
        %v2511 = vadd.f32 %v2479, 0.008333334
        %v2512 = vadd.f32 %v2480, 0.008333334
        %v2513 = vmul.f32 %v2481, %v2225
        %v2514 = vmul.f32 %v2482, %v2226
        %v2515 = vmul.f32 %v2483, %v2227
        %v2516 = vmul.f32 %v2484, %v2228
        %v2517 = vmul.f32 %v2485, %v2229
        %v2518 = vmul.f32 %v2486, %v2230
        %v2519 = vmul.f32 %v2487, %v2231
        %v2520 = vmul.f32 %v2488, %v2232
        %v2521 = vmul.f32 %v2489, %v2233
        %v2522 = vmul.f32 %v2490, %v2234
        %v2523 = vmul.f32 %v2491, %v2235
        %v2524 = vmul.f32 %v2492, %v2236
        %v2525 = vmul.f32 %v2493, %v2237
        %v2526 = vmul.f32 %v2494, %v2238
        %v2527 = vmul.f32 %v2495, %v2239
        %v2528 = vmul.f32 %v2496, %v2240
        %v2529 = vmul.f32 %v2497, %v2241
        %v2530 = vmul.f32 %v2498, %v2242
        %v2531 = vmul.f32 %v2499, %v2243
        %v2532 = vmul.f32 %v2500, %v2244
        %v2533 = vmul.f32 %v2501, %v2245
        %v2534 = vmul.f32 %v2502, %v2246
        %v2535 = vmul.f32 %v2503, %v2247
        %v2536 = vmul.f32 %v2504, %v2248
        %v2537 = vmul.f32 %v2505, %v2249
        %v2538 = vmul.f32 %v2506, %v2250
        %v2539 = vmul.f32 %v2507, %v2251
        %v2540 = vmul.f32 %v2508, %v2252
        %v2541 = vmul.f32 %v2509, %v2253
        %v2542 = vmul.f32 %v2510, %v2254
        %v2543 = vmul.f32 %v2511, %v2255
        %v2544 = vmul.f32 %v2512, %v2256
        %v2545 = vadd.f32 %v2513, -0.16666667
        %v2546 = vadd.f32 %v2514, -0.16666667
        %v2547 = vadd.f32 %v2515, -0.16666667
        %v2548 = vadd.f32 %v2516, -0.16666667
        %v2549 = vadd.f32 %v2517, -0.16666667
        %v2550 = vadd.f32 %v2518, -0.16666667
        %v2551 = vadd.f32 %v2519, -0.16666667
        %v2552 = vadd.f32 %v2520, -0.16666667
        %v2553 = vadd.f32 %v2521, -0.16666667
        %v2554 = vadd.f32 %v2522, -0.16666667
        %v2555 = vadd.f32 %v2523, -0.16666667
        %v2556 = vadd.f32 %v2524, -0.16666667
        %v2557 = vadd.f32 %v2525, -0.16666667
        %v2558 = vadd.f32 %v2526, -0.16666667
        %v2559 = vadd.f32 %v2527, -0.16666667
        %v2560 = vadd.f32 %v2528, -0.16666667
        %v2561 = vadd.f32 %v2529, -0.16666667
        %v2562 = vadd.f32 %v2530, -0.16666667
        %v2563 = vadd.f32 %v2531, -0.16666667
        %v2564 = vadd.f32 %v2532, -0.16666667
        %v2565 = vadd.f32 %v2533, -0.16666667
        %v2566 = vadd.f32 %v2534, -0.16666667
        %v2567 = vadd.f32 %v2535, -0.16666667
        %v2568 = vadd.f32 %v2536, -0.16666667
        %v2569 = vadd.f32 %v2537, -0.16666667
        %v2570 = vadd.f32 %v2538, -0.16666667
        %v2571 = vadd.f32 %v2539, -0.16666667
        %v2572 = vadd.f32 %v2540, -0.16666667
        %v2573 = vadd.f32 %v2541, -0.16666667
        %v2574 = vadd.f32 %v2542, -0.16666667
        %v2575 = vadd.f32 %v2543, -0.16666667
        %v2576 = vadd.f32 %v2544, -0.16666667
        %v2577 = vmul.f32 %v2193, %v2225
        %v2578 = vmul.f32 %v2194, %v2226
        %v2579 = vmul.f32 %v2195, %v2227
        %v2580 = vmul.f32 %v2196, %v2228
        %v2581 = vmul.f32 %v2197, %v2229
        %v2582 = vmul.f32 %v2198, %v2230
        %v2583 = vmul.f32 %v2199, %v2231
        %v2584 = vmul.f32 %v2200, %v2232
        %v2585 = vmul.f32 %v2201, %v2233
        %v2586 = vmul.f32 %v2202, %v2234
        %v2587 = vmul.f32 %v2203, %v2235
        %v2588 = vmul.f32 %v2204, %v2236
        %v2589 = vmul.f32 %v2205, %v2237
        %v2590 = vmul.f32 %v2206, %v2238
        %v2591 = vmul.f32 %v2207, %v2239
        %v2592 = vmul.f32 %v2208, %v2240
        %v2593 = vmul.f32 %v2209, %v2241
        %v2594 = vmul.f32 %v2210, %v2242
        %v2595 = vmul.f32 %v2211, %v2243
        %v2596 = vmul.f32 %v2212, %v2244
        %v2597 = vmul.f32 %v2213, %v2245
        %v2598 = vmul.f32 %v2214, %v2246
        %v2599 = vmul.f32 %v2215, %v2247
        %v2600 = vmul.f32 %v2216, %v2248
        %v2601 = vmul.f32 %v2217, %v2249
        %v2602 = vmul.f32 %v2218, %v2250
        %v2603 = vmul.f32 %v2219, %v2251
        %v2604 = vmul.f32 %v2220, %v2252
        %v2605 = vmul.f32 %v2221, %v2253
        %v2606 = vmul.f32 %v2222, %v2254
        %v2607 = vmul.f32 %v2223, %v2255
        %v2608 = vmul.f32 %v2224, %v2256
        %v2609 = vmul.f32 %v2577, %v2545
        %v2610 = vmul.f32 %v2578, %v2546
        %v2611 = vmul.f32 %v2579, %v2547
        %v2612 = vmul.f32 %v2580, %v2548
        %v2613 = vmul.f32 %v2581, %v2549
        %v2614 = vmul.f32 %v2582, %v2550
        %v2615 = vmul.f32 %v2583, %v2551
        %v2616 = vmul.f32 %v2584, %v2552
        %v2617 = vmul.f32 %v2585, %v2553
        %v2618 = vmul.f32 %v2586, %v2554
        %v2619 = vmul.f32 %v2587, %v2555
        %v2620 = vmul.f32 %v2588, %v2556
        %v2621 = vmul.f32 %v2589, %v2557
        %v2622 = vmul.f32 %v2590, %v2558
        %v2623 = vmul.f32 %v2591, %v2559
        %v2624 = vmul.f32 %v2592, %v2560
        %v2625 = vmul.f32 %v2593, %v2561
        %v2626 = vmul.f32 %v2594, %v2562
        %v2627 = vmul.f32 %v2595, %v2563
        %v2628 = vmul.f32 %v2596, %v2564
        %v2629 = vmul.f32 %v2597, %v2565
        %v2630 = vmul.f32 %v2598, %v2566
        %v2631 = vmul.f32 %v2599, %v2567
        %v2632 = vmul.f32 %v2600, %v2568
        %v2633 = vmul.f32 %v2601, %v2569
        %v2634 = vmul.f32 %v2602, %v2570
        %v2635 = vmul.f32 %v2603, %v2571
        %v2636 = vmul.f32 %v2604, %v2572
        %v2637 = vmul.f32 %v2605, %v2573
        %v2638 = vmul.f32 %v2606, %v2574
        %v2639 = vmul.f32 %v2607, %v2575
        %v2640 = vmul.f32 %v2608, %v2576
        %v2641 = vadd.f32 %v2193, %v2609
        %v2642 = vadd.f32 %v2194, %v2610
        %v2643 = vadd.f32 %v2195, %v2611
        %v2644 = vadd.f32 %v2196, %v2612
        %v2645 = vadd.f32 %v2197, %v2613
        %v2646 = vadd.f32 %v2198, %v2614
        %v2647 = vadd.f32 %v2199, %v2615
        %v2648 = vadd.f32 %v2200, %v2616
        %v2649 = vadd.f32 %v2201, %v2617
        %v2650 = vadd.f32 %v2202, %v2618
        %v2651 = vadd.f32 %v2203, %v2619
        %v2652 = vadd.f32 %v2204, %v2620
        %v2653 = vadd.f32 %v2205, %v2621
        %v2654 = vadd.f32 %v2206, %v2622
        %v2655 = vadd.f32 %v2207, %v2623
        %v2656 = vadd.f32 %v2208, %v2624
        %v2657 = vadd.f32 %v2209, %v2625
        %v2658 = vadd.f32 %v2210, %v2626
        %v2659 = vadd.f32 %v2211, %v2627
        %v2660 = vadd.f32 %v2212, %v2628
        %v2661 = vadd.f32 %v2213, %v2629
        %v2662 = vadd.f32 %v2214, %v2630
        %v2663 = vadd.f32 %v2215, %v2631
        %v2664 = vadd.f32 %v2216, %v2632
        %v2665 = vadd.f32 %v2217, %v2633
        %v2666 = vadd.f32 %v2218, %v2634
        %v2667 = vadd.f32 %v2219, %v2635
        %v2668 = vadd.f32 %v2220, %v2636
        %v2669 = vadd.f32 %v2221, %v2637
        %v2670 = vadd.f32 %v2222, %v2638
        %v2671 = vadd.f32 %v2223, %v2639
        %v2672 = vadd.f32 %v2224, %v2640
        %v2673 = vadd.f32 %v2641, %v1797
        %v2674 = vadd.f32 %v2642, %v1799
        %v2675 = vadd.f32 %v2643, %v1801
        %v2676 = vadd.f32 %v2644, %v1803
        %v2677 = vadd.f32 %v2645, %v1805
        %v2678 = vadd.f32 %v2646, %v1807
        %v2679 = vadd.f32 %v2647, %v1809
        %v2680 = vadd.f32 %v2648, %v1811
        %v2681 = vadd.f32 %v2649, %v1813
        %v2682 = vadd.f32 %v2650, %v1815
        %v2683 = vadd.f32 %v2651, %v1817
        %v2684 = vadd.f32 %v2652, %v1819
        %v2685 = vadd.f32 %v2653, %v1821
        %v2686 = vadd.f32 %v2654, %v1823
        %v2687 = vadd.f32 %v2655, %v1825
        %v2688 = vadd.f32 %v2656, %v1827
        %v2689 = vadd.f32 %v2657, %v1829
        %v2690 = vadd.f32 %v2658, %v1831
        %v2691 = vadd.f32 %v2659, %v1833
        %v2692 = vadd.f32 %v2660, %v1835
        %v2693 = vadd.f32 %v2661, %v1837
        %v2694 = vadd.f32 %v2662, %v1839
        %v2695 = vadd.f32 %v2663, %v1841
        %v2696 = vadd.f32 %v2664, %v1843
        %v2697 = vadd.f32 %v2665, %v1845
        %v2698 = vadd.f32 %v2666, %v1847
        %v2699 = vadd.f32 %v2667, %v1849
        %v2700 = vadd.f32 %v2668, %v1851
        %v2701 = vadd.f32 %v2669, %v1853
        %v2702 = vadd.f32 %v2670, %v1855
        %v2703 = vadd.f32 %v2671, %v1857
        %v2704 = vadd.f32 %v2672, %v1859
        %v2705 = vmul.f32 %v2673, 0.5
        %v2706 = vmul.f32 %v2674, 0.5
        %v2707 = vmul.f32 %v2675, 0.5
        %v2708 = vmul.f32 %v2676, 0.5
        %v2709 = vmul.f32 %v2677, 0.5
        %v2710 = vmul.f32 %v2678, 0.5
        %v2711 = vmul.f32 %v2679, 0.5
        %v2712 = vmul.f32 %v2680, 0.5
        %v2713 = vmul.f32 %v2681, 0.5
        %v2714 = vmul.f32 %v2682, 0.5
        %v2715 = vmul.f32 %v2683, 0.5
        %v2716 = vmul.f32 %v2684, 0.5
        %v2717 = vmul.f32 %v2685, 0.5
        %v2718 = vmul.f32 %v2686, 0.5
        %v2719 = vmul.f32 %v2687, 0.5
        %v2720 = vmul.f32 %v2688, 0.5
        %v2721 = vmul.f32 %v2689, 0.5
        %v2722 = vmul.f32 %v2690, 0.5
        %v2723 = vmul.f32 %v2691, 0.5
        %v2724 = vmul.f32 %v2692, 0.5
        %v2725 = vmul.f32 %v2693, 0.5
        %v2726 = vmul.f32 %v2694, 0.5
        %v2727 = vmul.f32 %v2695, 0.5
        %v2728 = vmul.f32 %v2696, 0.5
        %v2729 = vmul.f32 %v2697, 0.5
        %v2730 = vmul.f32 %v2698, 0.5
        %v2731 = vmul.f32 %v2699, 0.5
        %v2732 = vmul.f32 %v2700, 0.5
        %v2733 = vmul.f32 %v2701, 0.5
        %v2734 = vmul.f32 %v2702, 0.5
        %v2735 = vmul.f32 %v2703, 0.5
        %v2736 = vmul.f32 %v2704, 0.5
        %2737 = vst [vmem:[%s230] sm:$0xff] %v2705
        %2738 = vst [vmem:[%s230 + $0x8] sm:$0xff] %v2706
        %2739 = vst [vmem:[%s230 + $0x10] sm:$0xff] %v2707
        %2740 = vst [vmem:[%s230 + $0x18] sm:$0xff] %v2708
        %2741 = vst [vmem:[%s230 + $0x20] sm:$0xff] %v2709
        %2742 = vst [vmem:[%s230 + $0x28] sm:$0xff] %v2710
        %2743 = vst [vmem:[%s230 + $0x30] sm:$0xff] %v2711
        %2744 = vst [vmem:[%s230 + $0x38] sm:$0xff] %v2712
        %2745 = vst [vmem:[%s230 + $0x40] sm:$0xff] %v2713
        %2746 = vst [vmem:[%s230 + $0x48] sm:$0xff] %v2714
        %2747 = vst [vmem:[%s230 + $0x50] sm:$0xff] %v2715
        %2748 = vst [vmem:[%s230 + $0x58] sm:$0xff] %v2716
        %2749 = vst [vmem:[%s230 + $0x60] sm:$0xff] %v2717
        %2750 = vst [vmem:[%s230 + $0x68] sm:$0xff] %v2718
        %2751 = vst [vmem:[%s230 + $0x70] sm:$0xff] %v2719
        %2752 = vst [vmem:[%s230 + $0x78] sm:$0xff] %v2720
        %2753 = vst [vmem:[%s230 + $0x80] sm:$0xff] %v2721
        %2754 = vst [vmem:[%s230 + $0x88] sm:$0xff] %v2722
        %2755 = vst [vmem:[%s230 + $0x90] sm:$0xff] %v2723
        %2756 = vst [vmem:[%s230 + $0x98] sm:$0xff] %v2724
        %2757 = vst [vmem:[%s230 + $0xa0] sm:$0xff] %v2725
        %2758 = vst [vmem:[%s230 + $0xa8] sm:$0xff] %v2726
        %2759 = vst [vmem:[%s230 + $0xb0] sm:$0xff] %v2727
        %2760 = vst [vmem:[%s230 + $0xb8] sm:$0xff] %v2728
        %2761 = vst [vmem:[%s230 + $0xc0] sm:$0xff] %v2729
        %2762 = vst [vmem:[%s230 + $0xc8] sm:$0xff] %v2730
        %2763 = vst [vmem:[%s230 + $0xd0] sm:$0xff] %v2731
        %2764 = vst [vmem:[%s230 + $0xd8] sm:$0xff] %v2732
        %2765 = vst [vmem:[%s230 + $0xe0] sm:$0xff] %v2733
        %2766 = vst [vmem:[%s230 + $0xe8] sm:$0xff] %v2734
        %2767 = vst [vmem:[%s230 + $0xf0] sm:$0xff] %v2735
        %2768 = vst [vmem:[%s230 + $0xf8] sm:$0xff] %v2736
        %s2769 = sand.u32 %s137, 1
        %s2770 = scalar_lea.sflag [#allocation3], %s2769
        %s2771 = sand.u32 %s137, 1
        %s2772 = smul.addr %s2771, 256
        %s2773 = scalar_lea.vmem [#allocation2], %s2772
        // Predicated region
        $region41: #{tpu_custom_call.1} parent=39 // pred_check
          %p2774 = pneg %p147
        $region42: #{tpu_custom_call.1} parent=39 // pred_check_branch
          %2776 = sbr.rel (%p2774) target = $region44
        $region43: #{tpu_custom_call.1} parent=39 // pred_region
          %s2777 = smul.u32 32, %s19
          %s2778 = ssub.s32 80, %s2777
          %p2779 = scmp.lt.s32.totalorder %s2778, 32
          %s2780 = scalar_select %p2779, %s2778, 32
          %s2781 = smul.u32 8, %s2780
          %s2782 = ssub.s32 256, %s2781
          %s2783 = sshll.u32 %s2782, 4
          %2784 = vsyncadd %s2770, %s2783
          %p2785 = scmp.ne.s32.totalorder 0, %s2781
          %s2786 = smul.addr %s2777, 8
          %s2787 = scalar_lea.hbm %s5, %s2786
          %s2788 = smul.u32 8, %s2780
          %s2789 = sshll.u32 %s2773, 4
          %s2790 = int_to_ptr.vmem [resolvable:$true] %s2789
          %s2791 = sshll.u32 %s2787, 4
          %s2792 = int_to_ptr.hbm [resolvable:$true] %s2791
          %s2793 = sshll.u32 %s2788, 4
          %2797 = dma.vmem_to_hbm [thread:$0]  (%p2785), %s2790, %s2793, %s2792, %s2770, 128, 128, 8
        $region44: #{tpu_custom_call.1} parent=39 // pred_fallthru
          _
      $region40: #{tpu_custom_call.1} parent=5 // pred_fallthru
        _
      %p2798 = scmp.le.s32.totalorder 2, %s14
      // Predicated region
      $region45: #{tpu_custom_call.1} parent=5 // pred_check
        %p2799 = pneg %p2798
      $region46: #{tpu_custom_call.1} parent=5 // pred_check_branch
        %2801 = sbr.rel (%p2799) target = $region48
      $region47: #{tpu_custom_call.1} parent=5 // pred_region
        %s2802 = ssub.s32 %s14, 2
        // Predicated region
        $region49: #{tpu_custom_call.1} parent=47 // pred_check
          %p2803 = pneg %p153
        $region50: #{tpu_custom_call.1} parent=47 // pred_check_branch
          %2805 = sbr.rel (%p2803) target = $region52
        $region51: #{tpu_custom_call.1} parent=47 // pred_region
          %s2806 = sand.u32 %s138, 1
          %s2807 = scalar_lea.sflag [#allocation3], %s2806
          %s2808 = sand.u32 %s138, 1
          %s2809 = smul.addr %s2808, 256
          %s2810 = scalar_lea.vmem [#allocation2], %s2809
          %2812 = dma.done %s2807, 4096
        $region52: #{tpu_custom_call.1} parent=47 // pred_fallthru
          _
      $region48: #{tpu_custom_call.1} parent=5 // pred_fallthru
        _
    $region6: #{tpu_custom_call.1} parent=1 // loop_footer
      %s18 = sadd.s32 1, %s14
    $region7: #{tpu_custom_call.1} parent=1 // loop_footer_branch
      %13 = sbr.rel target = $region3
    $region8: #{tpu_custom_call.1} parent=1 // loop_exit
      _
    %2813 = vsyncpa [#allocation3], 1
    %s2814 = scalar_lea.sflag [#allocation3], 1
    %2815 = vsyncpa %s2814, 1

</llo_original>
